<compile_context>
chip_gen: v7x
topology: tpu7x:2x2x1
jax: 0.10.0
libtpu: 0.0.40
codegen_flags: <defaults>
</compile_context>

<pallas_src>
import functools

import jax
import jax.numpy as jnp
from jax.experimental import pallas as pl
from jax.experimental.pallas import tpu as pltpu


# --------------------------------------------------------------------------
# In-kernel helpers (operate on values, everything stays in vregs/VMEM)
# --------------------------------------------------------------------------
def _leaky_relu(y):
    return jnp.where(y >= 0, y, 0.2 * y)


def _pool2_rows(y, cout):
    """MaxPool1d(kernel=2, stride=2) along the flattened length axis.

    y: (R, Cout) with R = bt * seg (rows contiguous per batch element, seg even)
    -> (R // 2, Cout).  Adjacent-row max; pairs never cross a batch boundary.
    """
    r = y.shape[0]
    return jnp.max(y.reshape(r // 2, 2, cout), axis=1)


def _shifted_pm1(h2d, bt, seg):
    """Zero-padded +/-1 shifts along the length axis.

    h2d: (bt*seg, C), rows contiguous per batch element.
    prev[b*seg + l] = h[b, l-1]  (0 at l == 0)
    next[b*seg + l] = h[b, l+1]  (0 at l == seg-1)
    The zero rows double as the Conv1d padding=1 halo, so no jnp.pad / HBM
    padding copy is ever needed.
    """
    c = h2d.shape[1]
    h3 = h2d.reshape(bt, seg, c)
    zero = jnp.zeros((bt, 1, c), jnp.float32)
    prev = jnp.concatenate([zero, h3[:, : seg - 1, :]], axis=1)
    nxt = jnp.concatenate([h3[:, 1:, :], zero], axis=1)
    return prev.reshape(bt * seg, c), nxt.reshape(bt * seg, c)


# --------------------------------------------------------------------------
# Fused kernel: conv1 + conv2 + conv3 + linear for one batch tile
# --------------------------------------------------------------------------
def classifier_kernel(x_ref, w1_ref, b1_ref, w2_ref, b2_ref, w3_ref, b3_ref,
                      wl_ref, bl_ref, o_ref):
    """Shapes (per batch tile of bt, L = n_classes, F = n_features):
      x_ref : (bt*L, 1)           NLC input with Cin = 1
      w1_ref: (3, F)              b1_ref: (1, F)
      w2_ref: (3, F, 2F)          b2_ref: (1, 2F)
      w3_ref: (3, 2F, 4F)         b3_ref: (1, 4F)
      wl_ref: (L//8, 4F, n_labels)  (pre-permuted: Flatten folded in)
      bl_ref: (1, n_labels)
      o_ref : (bt, n_labels)
    """
    bt = o_ref.shape[0]
    n_labels = o_ref.shape[1]
    L = x_ref.shape[0] // bt

    # ---- stage 1: Conv1d(1, F, 3, 1, 1) + LeakyReLU + MaxPool(2) ----------
    # Cin == 1: use VPU broadcast FMAs (a K=1 MXU matmul would waste the
    # whole systolic array and the MRF drain).
    x = x_ref[...].astype(jnp.float32)                     # (bt*L, 1)
    x_prev, x_next = _shifted_pm1(x, bt, L)
    w1 = w1_ref[...]                                       # (3, F)
    f1 = w1.shape[1]
    y1 = (x_prev * w1[0:1, :] + x * w1[1:2, :] + x_next * w1[2:3, :]
          + b1_ref[...])
    h = _pool2_rows(_leaky_relu(y1), f1)                   # (bt*L/2, F)

    # ---- stages 2 & 3: Conv1d(k=3, p=1) = 3 lane-aligned MXU matmuls ------
    def conv_block(h2d, seg, w_ref, b_ref):
        cout = w_ref.shape[2]
        h_prev, h_next = _shifted_pm1(h2d, bt, seg)
        y = (jnp.dot(h_prev, w_ref[0], preferred_element_type=jnp.float32)
             + jnp.dot(h2d, w_ref[1], preferred_element_type=jnp.float32)
             + jnp.dot(h_next, w_ref[2], preferred_element_type=jnp.float32))
        y = y + b_ref[...]
        return _pool2_rows(_leaky_relu(y), cout)

    h = conv_block(h, L // 2, w2_ref, b2_ref)              # (bt*L/4, 2F)
    h = conv_block(h, L // 4, w3_ref, b3_ref)              # (bt*L/8, 4F)

    # ---- Flatten + Linear --------------------------------------------------
    # PyTorch's channel-major Flatten is folded into the pre-permuted weight
    # wl (L/8, 4F, n_labels): out[b] = sum_l h[b, l, :] @ wl[l]  (+ bias).
    l3 = L // 8
    c3 = h.shape[1]
    h3 = h.reshape(bt, l3, c3)
    acc = jnp.zeros((bt, n_labels), jnp.float32)
    for l in range(l3):                                    # static unroll
        acc = acc + jnp.dot(h3[:, l, :], wl_ref[l],
                            preferred_element_type=jnp.float32)
    o_ref[...] = acc + bl_ref[...]


# --------------------------------------------------------------------------
# Wrapper
# --------------------------------------------------------------------------
def _pick_batch_tile(batch, max_tile=256):
    """Largest tile dividing `batch` (multiple of 8 when actually tiling) so
    that per-step VMEM footprint stays small even on v7x (64 MiB VMEM) and
    the 'parallel' batch axis can be pipelined / split across TensorCores."""
    if batch <= max_tile:
        return batch
    for t in range(max_tile, 7, -1):
        if batch % t == 0 and t % 8 == 0:
            return t
    return batch


@functools.partial(jax.jit, static_argnames=("n_classes",))
def classifier_forward(x, kparams, n_classes):
    """x: (..., n_classes) float -> (B, n_labels).  Single fused Pallas kernel."""
    assert n_classes % 8 == 0, "n_classes must be divisible by 8"
    L = n_classes
    x2 = x.reshape(-1, L).astype(jnp.float32)
    B = x2.shape[0]
    x_col = x2.reshape(B * L, 1)                 # NLC with Cin=1 (free reshape)
    n_labels = kparams["bl"].shape[1]

    bt = _pick_batch_tile(B)
    grid = (B // bt,)

    w1, b1 = kparams["w1"], kparams["b1"]
    w2, b2 = kparams["w2"], kparams["b2"]
    w3, b3 = kparams["w3"], kparams["b3"]
    wl, bl = kparams["wl"], kparams["bl"]

    rep2 = lambda i: (0, 0)
    rep3 = lambda i: (0, 0, 0)

    return pl.pallas_call(
        classifier_kernel,
        out_shape=jax.ShapeDtypeStruct((B, n_labels), jnp.float32),
        grid=grid,
        in_specs=[
            pl.BlockSpec((bt * L, 1), lambda i: (i, 0)),
            pl.BlockSpec(w1.shape, rep2),
            pl.BlockSpec(b1.shape, rep2),
            pl.BlockSpec(w2.shape, rep3),
            pl.BlockSpec(b2.shape, rep2),
            pl.BlockSpec(w3.shape, rep3),
            pl.BlockSpec(b3.shape, rep2),
            pl.BlockSpec(wl.shape, rep3),
            pl.BlockSpec(bl.shape, rep2),
        ],
        out_specs=pl.BlockSpec((bt, n_labels), lambda i: (i, 0)),
        compiler_params=pltpu.CompilerParams(
            dimension_semantics=("parallel",),
            vmem_limit_bytes=32 * 1024 * 1024,
        ),
    )(x_col, w1, b1, w2, b2, w3, b3, wl, bl)


# --------------------------------------------------------------------------
# Parameters: PyTorch-layout init + one-time kernel-layout preparation
# --------------------------------------------------------------------------
def init_params(key, n_classes, n_labels, n_features):
    """Deterministic synthetic parameters in PyTorch layout:
       conv weights (Cout, Cin, 3), biases (Cout,), linear (n_labels, D)."""
    F = n_features
    ks = jax.random.split(key, 8)

    def conv_w(k, cout, cin):
        bound = (1.0 / (cin * 3)) ** 0.5
        return jax.random.uniform(k, (cout, cin, 3), jnp.float32, -bound, bound)

    D = 4 * F * (n_classes // 8)
    return {
        "w1": conv_w(ks[0], F, 1),
        "b1": 0.1 * jax.random.normal(ks[1], (F,), jnp.float32),
        "w2": conv_w(ks[2], 2 * F, F),
        "b2": 0.1 * jax.random.normal(ks[3], (2 * F,), jnp.float32),
        "w3": conv_w(ks[4], 4 * F, 2 * F),
        "b3": 0.1 * jax.random.normal(ks[5], (4 * F,), jnp.float32),
        # kaiming_normal_ on the Linear weight, PyTorch layout (n_labels, D)
        "wl": jax.random.normal(ks[6], (n_labels, D), jnp.float32) * (2.0 / D) ** 0.5,
        "bl": 0.1 * jax.random.normal(ks[7], (n_labels,), jnp.float32),
    }


def prepare_params(params_pt, n_classes):
    """One-time (offline) conversion of PyTorch-layout params to kernel layout.
    Folds the channel-major Flatten into the Linear weight so the kernel needs
    no activation transpose."""
    F = params_pt["w1"].shape[0]
    n_labels = params_pt["wl"].shape[0]
    L3 = n_classes // 8
    return {
        "w1": jnp.transpose(params_pt["w1"][:, 0, :], (1, 0)),        # (3, F)
        "b1": params_pt["b1"].reshape(1, -1),
        "w2": jnp.transpose(params_pt["w2"], (2, 1, 0)),              # (3, F, 2F)
        "b2": params_pt["b2"].reshape(1, -1),
        "w3": jnp.transpose(params_pt["w3"], (2, 1, 0)),              # (3, 2F, 4F)
        "b3": params_pt["b3"].reshape(1, -1),
        # (n_labels, 4F*L3) -> (L3, 4F, n_labels), wl[l, c, j] = W[j, c*L3 + l]
        "wl": jnp.transpose(params_pt["wl"].reshape(n_labels, 4 * F, L3),
                            (2, 1, 0)),
        "bl": params_pt["bl"].reshape(1, -1),
    }


# --------------------------------------------------------------------------
# Independent pure-JAX reference (mirrors the PyTorch module exactly)
# --------------------------------------------------------------------------
def reference_forward(x, params_pt, n_classes):
    B = x.reshape(-1, n_classes).shape[0]
    h = x.reshape(B, 1, n_classes).astype(jnp.float32)        # NCL

    def block(h, w, b):
        y = jax.lax.conv_general_dilated(
            h, w, window_strides=(1,), padding=((1, 1),),
            dimension_numbers=("NCH", "OIH", "NCH"))
        y = y + b[None, :, None]
        y = jnp.where(y >= 0, y, 0.2 * y)                     # LeakyReLU(0.2)
        Bc, C, Lc = y.shape
        return jnp.max(y.reshape(Bc, C, Lc // 2, 2), axis=3)  # MaxPool1d(2)

    h = block(h, params_pt["w1"], params_pt["b1"])
    h = block(h, params_pt["w2"], params_pt["b2"])
    h = block(h, params_pt["w3"], params_pt["b3"])
    flat = h.reshape(B, -1)                                   # channel-major Flatten
    return flat @ params_pt["wl"].T + params_pt["bl"]


# --------------------------------------------------------------------------
if __name__ == "__main__":
    n_classes = 32      # divisible by 8
    n_labels = 8
    n_features = 16
    batch = 2

    key = jax.random.PRNGKey(0)
    k_x, k_p = jax.random.split(key)
    x = jax.random.normal(k_x, (batch, n_classes), jnp.float32)

    params_pt = init_params(k_p, n_classes, n_labels, n_features)
    kparams = prepare_params(params_pt, n_classes)   # one-time layout transform

    out = classifier_forward(x, kparams, n_classes)
    out = jax.block_until_ready(out)

    ref = reference_forward(x, params_pt, n_classes)
    assert out.shape == (batch, n_labels), out.shape
    assert jnp.allclose(out, ref, atol=1e-3, rtol=1e-3), (out, ref)

    print("KERNEL_OK")
</pallas_src>

<mosaic_0001>
module attributes {stable_mosaic.version = 11 : i64} {
  func.func @classifier_kernel(%arg0: i32, %arg1: memref<64x1xf32, #tpu.memory_space<vmem>>, %arg2: memref<3x16xf32, #tpu.memory_space<vmem>>, %arg3: memref<1x16xf32, #tpu.memory_space<vmem>>, %arg4: memref<3x16x32xf32, #tpu.memory_space<vmem>>, %arg5: memref<1x32xf32, #tpu.memory_space<vmem>>, %arg6: memref<3x32x64xf32, #tpu.memory_space<vmem>>, %arg7: memref<1x64xf32, #tpu.memory_space<vmem>>, %arg8: memref<4x64x8xf32, #tpu.memory_space<vmem>>, %arg9: memref<1x8xf32, #tpu.memory_space<vmem>>, %arg10: memref<2x8xf32, #tpu.memory_space<vmem>>) attributes {dimension_semantics = [#tpu.dimension_semantics<parallel>], iteration_bounds = array<i64: 1>, scalar_prefetch = 0 : i64, scratch_operands = 0 : i64, tpu.core_type = #tpu.core_type<tc>, window_params = [{transform_indices = @transform_0, window_bounds = array<i64: 64, 1>}, {pipeline_mode = #tpu.pipeline_mode<synchronous>, transform_indices = @transform_1, window_bounds = array<i64: 3, 16>}, {pipeline_mode = #tpu.pipeline_mode<synchronous>, transform_indices = @transform_2, window_bounds = array<i64: 1, 16>}, {pipeline_mode = #tpu.pipeline_mode<synchronous>, transform_indices = @transform_3, window_bounds = array<i64: 3, 16, 32>}, {pipeline_mode = #tpu.pipeline_mode<synchronous>, transform_indices = @transform_4, window_bounds = array<i64: 1, 32>}, {pipeline_mode = #tpu.pipeline_mode<synchronous>, transform_indices = @transform_5, window_bounds = array<i64: 3, 32, 64>}, {pipeline_mode = #tpu.pipeline_mode<synchronous>, transform_indices = @transform_6, window_bounds = array<i64: 1, 64>}, {pipeline_mode = #tpu.pipeline_mode<synchronous>, transform_indices = @transform_7, window_bounds = array<i64: 4, 64, 8>}, {pipeline_mode = #tpu.pipeline_mode<synchronous>, transform_indices = @transform_8, window_bounds = array<i64: 1, 8>}, {transform_indices = @transform_9, window_bounds = array<i64: 2, 8>}]} {
    %c0 = arith.constant 0 : index
    %c0_0 = arith.constant 0 : index
    %0 = vector.load %arg1[%c0, %c0_0] : memref<64x1xf32, #tpu.memory_space<vmem>>, vector<64x1xf32>
    %1 = vector.shape_cast %0 : vector<64x1xf32> to vector<2x32x1xf32>
    %cst = arith.constant 0.000000e+00 : f32
    %2 = vector.broadcast %cst : f32 to vector<2x1x1xf32>
    %3 = vector.extract_strided_slice %1 {offsets = [0, 0, 0], sizes = [2, 31, 1], strides = [1, 1, 1]} : vector<2x32x1xf32> to vector<2x31x1xf32>
    %4 = tpu.concatenate %2, %3 in 1 : vector<2x1x1xf32>, vector<2x31x1xf32> -> vector<2x32x1xf32>
    %5 = vector.extract_strided_slice %1 {offsets = [0, 1, 0], sizes = [2, 31, 1], strides = [1, 1, 1]} : vector<2x32x1xf32> to vector<2x31x1xf32>
    %6 = tpu.concatenate %5, %2 in 1 : vector<2x31x1xf32>, vector<2x1x1xf32> -> vector<2x32x1xf32>
    %7 = vector.shape_cast %4 : vector<2x32x1xf32> to vector<64x1xf32>
    %8 = vector.shape_cast %6 : vector<2x32x1xf32> to vector<64x1xf32>
    %c0_1 = arith.constant 0 : index
    %c0_2 = arith.constant 0 : index
    %9 = vector.load %arg2[%c0_1, %c0_2] : memref<3x16xf32, #tpu.memory_space<vmem>>, vector<3x16xf32>
    %10 = vector.extract_strided_slice %9 {offsets = [0, 0], sizes = [1, 16], strides = [1, 1]} : vector<3x16xf32> to vector<1x16xf32>
    %11 = vector.broadcast %7 : vector<64x1xf32> to vector<64x16xf32>
    %12 = vector.broadcast %10 : vector<1x16xf32> to vector<64x16xf32>
    %13 = arith.mulf %11, %12 : vector<64x16xf32>
    %14 = vector.extract_strided_slice %9 {offsets = [1, 0], sizes = [1, 16], strides = [1, 1]} : vector<3x16xf32> to vector<1x16xf32>
    %15 = vector.broadcast %0 : vector<64x1xf32> to vector<64x16xf32>
    %16 = vector.broadcast %14 : vector<1x16xf32> to vector<64x16xf32>
    %17 = arith.mulf %15, %16 : vector<64x16xf32>
    %18 = arith.addf %13, %17 : vector<64x16xf32>
    %19 = vector.extract_strided_slice %9 {offsets = [2, 0], sizes = [1, 16], strides = [1, 1]} : vector<3x16xf32> to vector<1x16xf32>
    %20 = vector.broadcast %8 : vector<64x1xf32> to vector<64x16xf32>
    %21 = vector.broadcast %19 : vector<1x16xf32> to vector<64x16xf32>
    %22 = arith.mulf %20, %21 : vector<64x16xf32>
    %23 = arith.addf %18, %22 : vector<64x16xf32>
    %c0_3 = arith.constant 0 : index
    %c0_4 = arith.constant 0 : index
    %24 = vector.load %arg3[%c0_3, %c0_4] : memref<1x16xf32, #tpu.memory_space<vmem>>, vector<1x16xf32>
    %25 = vector.broadcast %24 : vector<1x16xf32> to vector<64x16xf32>
    %26 = arith.addf %23, %25 : vector<64x16xf32>
    %cst_5 = arith.constant 0.000000e+00 : f32
    %27 = vector.broadcast %cst_5 : f32 to vector<64x16xf32>
    %28 = arith.cmpf oge, %26, %27 : vector<64x16xf32>
    %cst_6 = arith.constant 2.000000e-01 : f32
    %29 = vector.broadcast %cst_6 : f32 to vector<64x16xf32>
    %30 = arith.mulf %29, %26 : vector<64x16xf32>
    %31 = arith.select %28, %26, %30 : vector<64x16xi1>, vector<64x16xf32>
    %32 = vector.shape_cast %31 : vector<64x16xf32> to vector<32x2x16xf32>
    %cst_7 = arith.constant dense<0xFF800000> : vector<32x16xf32>
    %33 = vector.multi_reduction <maximumf>, %32, %cst_7 [1] : vector<32x2x16xf32> to vector<32x16xf32>
    %34 = vector.shape_cast %33 : vector<32x16xf32> to vector<2x16x16xf32>
    %cst_8 = arith.constant 0.000000e+00 : f32
    %35 = vector.broadcast %cst_8 : f32 to vector<2x1x16xf32>
    %36 = vector.extract_strided_slice %34 {offsets = [0, 0, 0], sizes = [2, 15, 16], strides = [1, 1, 1]} : vector<2x16x16xf32> to vector<2x15x16xf32>
    %37 = tpu.concatenate %35, %36 in 1 : vector<2x1x16xf32>, vector<2x15x16xf32> -> vector<2x16x16xf32>
    %38 = vector.extract_strided_slice %34 {offsets = [0, 1, 0], sizes = [2, 15, 16], strides = [1, 1, 1]} : vector<2x16x16xf32> to vector<2x15x16xf32>
    %39 = tpu.concatenate %38, %35 in 1 : vector<2x15x16xf32>, vector<2x1x16xf32> -> vector<2x16x16xf32>
    %40 = vector.shape_cast %37 : vector<2x16x16xf32> to vector<32x16xf32>
    %41 = vector.shape_cast %39 : vector<2x16x16xf32> to vector<32x16xf32>
    %c0_9 = arith.constant 0 : index
    %c0_10 = arith.constant 0 : index
    %c0_11 = arith.constant 0 : index
    %42 = vector.load %arg4[%c0_9, %c0_10, %c0_11] : memref<3x16x32xf32, #tpu.memory_space<vmem>>, vector<1x16x32xf32>
    %43 = vector.shape_cast %42 : vector<1x16x32xf32> to vector<16x32xf32>
    %cst_12 = arith.constant dense<0.000000e+00> : vector<32x32xf32>
    %44 = tpu.matmul %40, %43, %cst_12 {dimension_numbers = #tpu.dot_dimension_numbers<[1], [0], [0], [1], [0, 0, 1, 1], [], []>} : vector<32x16xf32>, vector<16x32xf32>, vector<32x32xf32> -> vector<32x32xf32>
    %c1 = arith.constant 1 : index
    %c0_13 = arith.constant 0 : index
    %c0_14 = arith.constant 0 : index
    %45 = vector.load %arg4[%c1, %c0_13, %c0_14] : memref<3x16x32xf32, #tpu.memory_space<vmem>>, vector<1x16x32xf32>
    %46 = vector.shape_cast %45 : vector<1x16x32xf32> to vector<16x32xf32>
    %cst_15 = arith.constant dense<0.000000e+00> : vector<32x32xf32>
    %47 = tpu.matmul %33, %46, %cst_15 {dimension_numbers = #tpu.dot_dimension_numbers<[1], [0], [0], [1], [0, 0, 1, 1], [], []>} : vector<32x16xf32>, vector<16x32xf32>, vector<32x32xf32> -> vector<32x32xf32>
    %48 = arith.addf %44, %47 : vector<32x32xf32>
    %c2 = arith.constant 2 : index
    %c0_16 = arith.constant 0 : index
    %c0_17 = arith.constant 0 : index
    %49 = vector.load %arg4[%c2, %c0_16, %c0_17] : memref<3x16x32xf32, #tpu.memory_space<vmem>>, vector<1x16x32xf32>
    %50 = vector.shape_cast %49 : vector<1x16x32xf32> to vector<16x32xf32>
    %cst_18 = arith.constant dense<0.000000e+00> : vector<32x32xf32>
    %51 = tpu.matmul %41, %50, %cst_18 {dimension_numbers = #tpu.dot_dimension_numbers<[1], [0], [0], [1], [0, 0, 1, 1], [], []>} : vector<32x16xf32>, vector<16x32xf32>, vector<32x32xf32> -> vector<32x32xf32>
    %52 = arith.addf %48, %51 : vector<32x32xf32>
    %c0_19 = arith.constant 0 : index
    %c0_20 = arith.constant 0 : index
    %53 = vector.load %arg5[%c0_19, %c0_20] : memref<1x32xf32, #tpu.memory_space<vmem>>, vector<1x32xf32>
    %54 = vector.broadcast %53 : vector<1x32xf32> to vector<32x32xf32>
    %55 = arith.addf %52, %54 : vector<32x32xf32>
    %cst_21 = arith.constant 0.000000e+00 : f32
    %56 = vector.broadcast %cst_21 : f32 to vector<32x32xf32>
    %57 = arith.cmpf oge, %55, %56 : vector<32x32xf32>
    %cst_22 = arith.constant 2.000000e-01 : f32
    %58 = vector.broadcast %cst_22 : f32 to vector<32x32xf32>
    %59 = arith.mulf %58, %55 : vector<32x32xf32>
    %60 = arith.select %57, %55, %59 : vector<32x32xi1>, vector<32x32xf32>
    %61 = vector.shape_cast %60 : vector<32x32xf32> to vector<16x2x32xf32>
    %cst_23 = arith.constant dense<0xFF800000> : vector<16x32xf32>
    %62 = vector.multi_reduction <maximumf>, %61, %cst_23 [1] : vector<16x2x32xf32> to vector<16x32xf32>
    %63 = vector.shape_cast %62 : vector<16x32xf32> to vector<2x8x32xf32>
    %cst_24 = arith.constant 0.000000e+00 : f32
    %64 = vector.broadcast %cst_24 : f32 to vector<2x1x32xf32>
    %65 = vector.extract_strided_slice %63 {offsets = [0, 0, 0], sizes = [2, 7, 32], strides = [1, 1, 1]} : vector<2x8x32xf32> to vector<2x7x32xf32>
    %66 = tpu.concatenate %64, %65 in 1 : vector<2x1x32xf32>, vector<2x7x32xf32> -> vector<2x8x32xf32>
    %67 = vector.extract_strided_slice %63 {offsets = [0, 1, 0], sizes = [2, 7, 32], strides = [1, 1, 1]} : vector<2x8x32xf32> to vector<2x7x32xf32>
    %68 = tpu.concatenate %67, %64 in 1 : vector<2x7x32xf32>, vector<2x1x32xf32> -> vector<2x8x32xf32>
    %69 = vector.shape_cast %66 : vector<2x8x32xf32> to vector<16x32xf32>
    %70 = vector.shape_cast %68 : vector<2x8x32xf32> to vector<16x32xf32>
    %c0_25 = arith.constant 0 : index
    %c0_26 = arith.constant 0 : index
    %c0_27 = arith.constant 0 : index
    %71 = vector.load %arg6[%c0_25, %c0_26, %c0_27] : memref<3x32x64xf32, #tpu.memory_space<vmem>>, vector<1x32x64xf32>
    %72 = vector.shape_cast %71 : vector<1x32x64xf32> to vector<32x64xf32>
    %cst_28 = arith.constant dense<0.000000e+00> : vector<16x64xf32>
    %73 = tpu.matmul %69, %72, %cst_28 {dimension_numbers = #tpu.dot_dimension_numbers<[1], [0], [0], [1], [0, 0, 1, 1], [], []>} : vector<16x32xf32>, vector<32x64xf32>, vector<16x64xf32> -> vector<16x64xf32>
    %c1_29 = arith.constant 1 : index
    %c0_30 = arith.constant 0 : index
    %c0_31 = arith.constant 0 : index
    %74 = vector.load %arg6[%c1_29, %c0_30, %c0_31] : memref<3x32x64xf32, #tpu.memory_space<vmem>>, vector<1x32x64xf32>
    %75 = vector.shape_cast %74 : vector<1x32x64xf32> to vector<32x64xf32>
    %cst_32 = arith.constant dense<0.000000e+00> : vector<16x64xf32>
    %76 = tpu.matmul %62, %75, %cst_32 {dimension_numbers = #tpu.dot_dimension_numbers<[1], [0], [0], [1], [0, 0, 1, 1], [], []>} : vector<16x32xf32>, vector<32x64xf32>, vector<16x64xf32> -> vector<16x64xf32>
    %77 = arith.addf %73, %76 : vector<16x64xf32>
    %c2_33 = arith.constant 2 : index
    %c0_34 = arith.constant 0 : index
    %c0_35 = arith.constant 0 : index
    %78 = vector.load %arg6[%c2_33, %c0_34, %c0_35] : memref<3x32x64xf32, #tpu.memory_space<vmem>>, vector<1x32x64xf32>
    %79 = vector.shape_cast %78 : vector<1x32x64xf32> to vector<32x64xf32>
    %cst_36 = arith.constant dense<0.000000e+00> : vector<16x64xf32>
    %80 = tpu.matmul %70, %79, %cst_36 {dimension_numbers = #tpu.dot_dimension_numbers<[1], [0], [0], [1], [0, 0, 1, 1], [], []>} : vector<16x32xf32>, vector<32x64xf32>, vector<16x64xf32> -> vector<16x64xf32>
    %81 = arith.addf %77, %80 : vector<16x64xf32>
    %c0_37 = arith.constant 0 : index
    %c0_38 = arith.constant 0 : index
    %82 = vector.load %arg7[%c0_37, %c0_38] : memref<1x64xf32, #tpu.memory_space<vmem>>, vector<1x64xf32>
    %83 = vector.broadcast %82 : vector<1x64xf32> to vector<16x64xf32>
    %84 = arith.addf %81, %83 : vector<16x64xf32>
    %cst_39 = arith.constant 0.000000e+00 : f32
    %85 = vector.broadcast %cst_39 : f32 to vector<16x64xf32>
    %86 = arith.cmpf oge, %84, %85 : vector<16x64xf32>
    %cst_40 = arith.constant 2.000000e-01 : f32
    %87 = vector.broadcast %cst_40 : f32 to vector<16x64xf32>
    %88 = arith.mulf %87, %84 : vector<16x64xf32>
    %89 = arith.select %86, %84, %88 : vector<16x64xi1>, vector<16x64xf32>
    %90 = vector.shape_cast %89 : vector<16x64xf32> to vector<8x2x64xf32>
    %cst_41 = arith.constant dense<0xFF800000> : vector<8x64xf32>
    %91 = vector.multi_reduction <maximumf>, %90, %cst_41 [1] : vector<8x2x64xf32> to vector<8x64xf32>
    %92 = vector.shape_cast %91 : vector<8x64xf32> to vector<2x4x64xf32>
    %cst_42 = arith.constant 0.000000e+00 : f32
    %93 = vector.broadcast %cst_42 : f32 to vector<2x8xf32>
    %94 = vector.extract_strided_slice %92 {offsets = [0, 0, 0], sizes = [2, 1, 64], strides = [1, 1, 1]} : vector<2x4x64xf32> to vector<2x1x64xf32>
    %95 = vector.shape_cast %94 : vector<2x1x64xf32> to vector<2x64xf32>
    %c0_43 = arith.constant 0 : index
    %c0_44 = arith.constant 0 : index
    %c0_45 = arith.constant 0 : index
    %96 = vector.load %arg8[%c0_43, %c0_44, %c0_45] : memref<4x64x8xf32, #tpu.memory_space<vmem>>, vector<1x64x8xf32>
    %97 = vector.shape_cast %96 : vector<1x64x8xf32> to vector<64x8xf32>
    %cst_46 = arith.constant dense<0.000000e+00> : vector<2x8xf32>
    %98 = tpu.matmul %95, %97, %cst_46 {dimension_numbers = #tpu.dot_dimension_numbers<[1], [0], [0], [1], [0, 0, 1, 1], [], []>} : vector<2x64xf32>, vector<64x8xf32>, vector<2x8xf32> -> vector<2x8xf32>
    %99 = arith.addf %93, %98 : vector<2x8xf32>
    %100 = vector.extract_strided_slice %92 {offsets = [0, 1, 0], sizes = [2, 1, 64], strides = [1, 1, 1]} : vector<2x4x64xf32> to vector<2x1x64xf32>
    %101 = vector.shape_cast %100 : vector<2x1x64xf32> to vector<2x64xf32>
    %c1_47 = arith.constant 1 : index
    %c0_48 = arith.constant 0 : index
    %c0_49 = arith.constant 0 : index
    %102 = vector.load %arg8[%c1_47, %c0_48, %c0_49] : memref<4x64x8xf32, #tpu.memory_space<vmem>>, vector<1x64x8xf32>
    %103 = vector.shape_cast %102 : vector<1x64x8xf32> to vector<64x8xf32>
    %cst_50 = arith.constant dense<0.000000e+00> : vector<2x8xf32>
    %104 = tpu.matmul %101, %103, %cst_50 {dimension_numbers = #tpu.dot_dimension_numbers<[1], [0], [0], [1], [0, 0, 1, 1], [], []>} : vector<2x64xf32>, vector<64x8xf32>, vector<2x8xf32> -> vector<2x8xf32>
    %105 = arith.addf %99, %104 : vector<2x8xf32>
    %106 = vector.extract_strided_slice %92 {offsets = [0, 2, 0], sizes = [2, 1, 64], strides = [1, 1, 1]} : vector<2x4x64xf32> to vector<2x1x64xf32>
    %107 = vector.shape_cast %106 : vector<2x1x64xf32> to vector<2x64xf32>
    %c2_51 = arith.constant 2 : index
    %c0_52 = arith.constant 0 : index
    %c0_53 = arith.constant 0 : index
    %108 = vector.load %arg8[%c2_51, %c0_52, %c0_53] : memref<4x64x8xf32, #tpu.memory_space<vmem>>, vector<1x64x8xf32>
    %109 = vector.shape_cast %108 : vector<1x64x8xf32> to vector<64x8xf32>
    %cst_54 = arith.constant dense<0.000000e+00> : vector<2x8xf32>
    %110 = tpu.matmul %107, %109, %cst_54 {dimension_numbers = #tpu.dot_dimension_numbers<[1], [0], [0], [1], [0, 0, 1, 1], [], []>} : vector<2x64xf32>, vector<64x8xf32>, vector<2x8xf32> -> vector<2x8xf32>
    %111 = arith.addf %105, %110 : vector<2x8xf32>
    %112 = vector.extract_strided_slice %92 {offsets = [0, 3, 0], sizes = [2, 1, 64], strides = [1, 1, 1]} : vector<2x4x64xf32> to vector<2x1x64xf32>
    %113 = vector.shape_cast %112 : vector<2x1x64xf32> to vector<2x64xf32>
    %c3 = arith.constant 3 : index
    %c0_55 = arith.constant 0 : index
    %c0_56 = arith.constant 0 : index
    %114 = vector.load %arg8[%c3, %c0_55, %c0_56] : memref<4x64x8xf32, #tpu.memory_space<vmem>>, vector<1x64x8xf32>
    %115 = vector.shape_cast %114 : vector<1x64x8xf32> to vector<64x8xf32>
    %cst_57 = arith.constant dense<0.000000e+00> : vector<2x8xf32>
    %116 = tpu.matmul %113, %115, %cst_57 {dimension_numbers = #tpu.dot_dimension_numbers<[1], [0], [0], [1], [0, 0, 1, 1], [], []>} : vector<2x64xf32>, vector<64x8xf32>, vector<2x8xf32> -> vector<2x8xf32>
    %117 = arith.addf %111, %116 : vector<2x8xf32>
    %c0_58 = arith.constant 0 : index
    %c0_59 = arith.constant 0 : index
    %118 = vector.load %arg9[%c0_58, %c0_59] : memref<1x8xf32, #tpu.memory_space<vmem>>, vector<1x8xf32>
    %119 = vector.broadcast %118 : vector<1x8xf32> to vector<2x8xf32>
    %120 = arith.addf %117, %119 : vector<2x8xf32>
    %c0_60 = arith.constant 0 : index
    %c0_61 = arith.constant 0 : index
    %121 = vector.load %arg10[%c0_60, %c0_61] : memref<2x8xf32, #tpu.memory_space<vmem>>, vector<2x8xf32>
    tpu.vector_store %arg10[%c0_60, %c0_61], %120 {strides = array<i32>} : memref<2x8xf32, #tpu.memory_space<vmem>>, vector<2x8xf32>,
    return
  }
  func.func @transform_0(%arg0: i32) -> (i32, i32) {
    %c0_i32 = arith.constant 0 : i32
    %c0_i32_0 = arith.constant 0 : i32
    return %arg0, %c0_i32 : i32, i32
  }
  func.func @transform_1(%arg0: i32) -> (i32, i32) {
    %c0_i32 = arith.constant 0 : i32
    %c0_i32_0 = arith.constant 0 : i32
    %c0_i32_1 = arith.constant 0 : i32
    return %c0_i32, %c0_i32_0 : i32, i32
  }
  func.func @transform_2(%arg0: i32) -> (i32, i32) {
    %c0_i32 = arith.constant 0 : i32
    %c0_i32_0 = arith.constant 0 : i32
    %c0_i32_1 = arith.constant 0 : i32
    return %c0_i32, %c0_i32_0 : i32, i32
  }
  func.func @transform_3(%arg0: i32) -> (i32, i32, i32) {
    %c0_i32 = arith.constant 0 : i32
    %c0_i32_0 = arith.constant 0 : i32
    %c0_i32_1 = arith.constant 0 : i32
    %c0_i32_2 = arith.constant 0 : i32
    return %c0_i32, %c0_i32_0, %c0_i32_1 : i32, i32, i32
  }
  func.func @transform_4(%arg0: i32) -> (i32, i32) {
    %c0_i32 = arith.constant 0 : i32
    %c0_i32_0 = arith.constant 0 : i32
    %c0_i32_1 = arith.constant 0 : i32
    return %c0_i32, %c0_i32_0 : i32, i32
  }
  func.func @transform_5(%arg0: i32) -> (i32, i32, i32) {
    %c0_i32 = arith.constant 0 : i32
    %c0_i32_0 = arith.constant 0 : i32
    %c0_i32_1 = arith.constant 0 : i32
    %c0_i32_2 = arith.constant 0 : i32
    return %c0_i32, %c0_i32_0, %c0_i32_1 : i32, i32, i32
  }
  func.func @transform_6(%arg0: i32) -> (i32, i32) {
    %c0_i32 = arith.constant 0 : i32
    %c0_i32_0 = arith.constant 0 : i32
    %c0_i32_1 = arith.constant 0 : i32
    return %c0_i32, %c0_i32_0 : i32, i32
  }
  func.func @transform_7(%arg0: i32) -> (i32, i32, i32) {
    %c0_i32 = arith.constant 0 : i32
    %c0_i32_0 = arith.constant 0 : i32
    %c0_i32_1 = arith.constant 0 : i32
    %c0_i32_2 = arith.constant 0 : i32
    return %c0_i32, %c0_i32_0, %c0_i32_1 : i32, i32, i32
  }
  func.func @transform_8(%arg0: i32) -> (i32, i32) {
    %c0_i32 = arith.constant 0 : i32
    %c0_i32_0 = arith.constant 0 : i32
    %c0_i32_1 = arith.constant 0 : i32
    return %c0_i32, %c0_i32_0 : i32, i32
  }
  func.func @transform_9(%arg0: i32) -> (i32, i32) {
    %c0_i32 = arith.constant 0 : i32
    %c0_i32_0 = arith.constant 0 : i32
    return %arg0, %c0_i32 : i32, i32
  }
}

</mosaic_0001>

<llo_original>
// kernel: classifier_forward.1
$region0: #{classifier_forward.1}
  #allocation0 [shape = 'u32[]', space=smem, size = 0x4, offset = 0x4, fixed_abs, tag = 'smem constant byte address 0x4 - core index']
  #allocation1 [shape = 'u32[144,128]{1,0:T(1,128)}', space=vmem, size = 0x12000, scoped, tag = 'internal scratch']
  %s0 = inlined_call_operand.vmem [shape: f32[64,1], index: 0, kind: input, shape index: {}]
  %s1 = inlined_call_operand.vmem [shape: f32[3,16], index: 1, kind: input, shape index: {}]
  %s2 = inlined_call_operand.vmem [shape: f32[1,16], index: 2, kind: input, shape index: {}]
  %s3 = inlined_call_operand.vmem [shape: f32[3,16,32], index: 3, kind: input, shape index: {}]
  %s4 = inlined_call_operand.vmem [shape: f32[1,32], index: 4, kind: input, shape index: {}]
  %s5 = inlined_call_operand.vmem [shape: f32[3,32,64], index: 5, kind: input, shape index: {}]
  %s6 = inlined_call_operand.vmem [shape: f32[1,64], index: 6, kind: input, shape index: {}]
  %s7 = inlined_call_operand.vmem [shape: f32[4,64,8], index: 7, kind: input, shape index: {}]
  %s8 = inlined_call_operand.vmem [shape: f32[1,8], index: 8, kind: input, shape index: {}]
  %s9 = inlined_call_operand.hbm [shape: f32[2,8], index: 9, kind: output, shape index: {}]
  %s10 = sld [smem:[#allocation0]]
  $region46: #{classifier_forward.1} parent=0
    _
  %s12 = ssub.s32 1, %s10
  %s13 = scalar_select 0, %s12, %s10
  $region1: #{classifier_forward.1} parent=0
    #allocation2 [shape = 'u8[1024]{0}', space=vmem, size = 0x400, scoped, tag = 'output window, operand 0, single buffered']
    #allocation3 [shape = 's32[1]{0}', space=sflag, size = 0x4, scoped, tag = 'scoped memory for classifier_forward.1']
    %14 = vsyncpa [#allocation3], 0
    // Predicated region
    $region2: #{classifier_forward.1} parent=1 // pred_check
      _
    $region3: #{classifier_forward.1} parent=1 // pred_check_branch
      %16 = sbr.rel (0) target = $region5
    $region4: #{classifier_forward.1} parent=1 // pred_region
      _
    $region5: #{classifier_forward.1} parent=1 // pred_fallthru
      _
    // Predicated region
    $region6: #{classifier_forward.1} parent=1 // pred_check
      _
    $region7: #{classifier_forward.1} parent=1 // pred_check_branch
      %18 = sbr.rel (0) target = $region9
    $region8: #{classifier_forward.1} parent=1 // pred_region
      _
    $region9: #{classifier_forward.1} parent=1 // pred_fallthru
      _
    // Predicated region
    $region10: #{classifier_forward.1} parent=1 // pred_check
      _
    $region11: #{classifier_forward.1} parent=1 // pred_check_branch
      %20 = sbr.rel (0) target = $region13
    $region12: #{classifier_forward.1} parent=1 // pred_region
      _
    $region13: #{classifier_forward.1} parent=1 // pred_fallthru
      _
    // Predicated region
    $region14: #{classifier_forward.1} parent=1 // pred_check
      _
    $region15: #{classifier_forward.1} parent=1 // pred_check_branch
      %22 = sbr.rel (0) target = $region17
    $region16: #{classifier_forward.1} parent=1 // pred_region
      _
    $region17: #{classifier_forward.1} parent=1 // pred_fallthru
      _
    // Predicated region
    $region18: #{classifier_forward.1} parent=1 // pred_check
      _
    $region19: #{classifier_forward.1} parent=1 // pred_check_branch
      %24 = sbr.rel (0) target = $region21
    $region20: #{classifier_forward.1} parent=1 // pred_region
      _
    $region21: #{classifier_forward.1} parent=1 // pred_fallthru
      _
    // Predicated region
    $region22: #{classifier_forward.1} parent=1 // pred_check
      _
    $region23: #{classifier_forward.1} parent=1 // pred_check_branch
      %26 = sbr.rel (0) target = $region25
    $region24: #{classifier_forward.1} parent=1 // pred_region
      _
    $region25: #{classifier_forward.1} parent=1 // pred_fallthru
      _
    // Predicated region
    $region26: #{classifier_forward.1} parent=1 // pred_check
      _
    $region27: #{classifier_forward.1} parent=1 // pred_check_branch
      %28 = sbr.rel (0) target = $region29
    $region28: #{classifier_forward.1} parent=1 // pred_region
      _
    $region29: #{classifier_forward.1} parent=1 // pred_fallthru
      _
    // Predicated region
    $region30: #{classifier_forward.1} parent=1 // pred_check
      _
    $region31: #{classifier_forward.1} parent=1 // pred_check_branch
      %30 = sbr.rel (0) target = $region33
    $region32: #{classifier_forward.1} parent=1 // pred_region
      _
    $region33: #{classifier_forward.1} parent=1 // pred_fallthru
      _
    // Predicated region
    $region34: #{classifier_forward.1} parent=1 // pred_check
      _
    $region35: #{classifier_forward.1} parent=1 // pred_check_branch
      %32 = sbr.rel (0) target = $region37
    $region36: #{classifier_forward.1} parent=1 // pred_region
      _
    $region37: #{classifier_forward.1} parent=1 // pred_fallthru
      _
    %v33 = vld [vmem:[%s0] sm:$0xff]
    %v34 = vld [vmem:[%s0 + $0x8] sm:$0xff]
    %v35 = vld [vmem:[%s0 + $0x10] sm:$0xff]
    %v36 = vld [vmem:[%s0 + $0x18] sm:$0xff]
    %v37 = vld [vmem:[%s0 + $0x20] sm:$0xff]
    %v38 = vld [vmem:[%s0 + $0x28] sm:$0xff]
    %v39 = vld [vmem:[%s0 + $0x30] sm:$0xff]
    %v40 = vld [vmem:[%s0 + $0x38] sm:$0xff]
    %vm49 = vcmask 1040384
    %v50 = vrot.slane %v33, 7
    %v51 = vrot.slane %v34, 7
    %v52 = vsel %vm49, %v50, %v51
    %v53 = vrot.slane %v35, 7
    %v54 = vsel %vm49, %v51, %v53
    %v55 = vrot.slane %v36, 7
    %v56 = vsel %vm49, %v53, %v55
    %v57 = vrot.slane %v37, 7
    %v58 = vrot.slane %v38, 7
    %v59 = vsel %vm49, %v57, %v58
    %v60 = vrot.slane %v39, 7
    %v61 = vsel %vm49, %v58, %v60
    %v62 = vrot.slane %v40, 7
    %v63 = vsel %vm49, %v60, %v62
    %v66 = vsel %vm49, 0.0, %v50
    %v67 = vsel %vm49, 0.0, %v57
    %vm68 = vcmask 1046528
    %v69 = vrot.slane %v33, 1
    %v70 = vrot.slane %v34, 1
    %v71 = vsel %vm68, %v69, %v70
    %v72 = vrot.slane %v35, 1
    %v73 = vsel %vm68, %v70, %v72
    %v74 = vrot.slane %v36, 1
    %v75 = vsel %vm68, %v72, %v74
    %v76 = vrot.slane %v37, 1
    %v77 = vrot.slane %v38, 1
    %v78 = vsel %vm68, %v76, %v77
    %v79 = vrot.slane %v39, 1
    %v80 = vsel %vm68, %v77, %v79
    %v81 = vrot.slane %v40, 1
    %v82 = vsel %vm68, %v79, %v81
    %v85 = vsel %vm68, %v74, 0.0
    %v86 = vsel %vm68, %v81, 0.0
    %v87 = vld [vmem:[%s1] sm:$0x7]
    %89 = vset.pattern.permute.xlu0 0
    %90 = vperm.xlu0 %89, %v66
    %v91 = vpop.permute.xlu0 %90
    %93 = vset.pattern.permute.xlu0 0
    %94 = vperm.xlu0 %93, %v52
    %v95 = vpop.permute.xlu0 %94
    %97 = vset.pattern.permute.xlu0 0
    %98 = vperm.xlu0 %97, %v54
    %v99 = vpop.permute.xlu0 %98
    %101 = vset.pattern.permute.xlu0 0
    %102 = vperm.xlu0 %101, %v56
    %v103 = vpop.permute.xlu0 %102
    %106 = vset.pattern.permute.xlu0 0
    %107 = vperm.xlu0 %106, %v67
    %v108 = vpop.permute.xlu0 %107
    %110 = vset.pattern.permute.xlu0 0
    %111 = vperm.xlu0 %110, %v59
    %v112 = vpop.permute.xlu0 %111
    %114 = vset.pattern.permute.xlu0 0
    %115 = vperm.xlu0 %114, %v61
    %v116 = vpop.permute.xlu0 %115
    %118 = vset.pattern.permute.xlu0 0
    %119 = vperm.xlu0 %118, %v63
    %v120 = vpop.permute.xlu0 %119
    %v122 = vlaneseq
    %v123 = vshrl.u32 %v122, 7
    %v124 = vsub.s32 0, %v123
    %v125 = vrot.slane %v87, %v124
    %v126 = vmul.f32 %v91, %v125
    %v127 = vmul.f32 %v95, %v125
    %v128 = vmul.f32 %v99, %v125
    %v129 = vmul.f32 %v103, %v125
    %v130 = vmul.f32 %v108, %v125
    %v131 = vmul.f32 %v112, %v125
    %v132 = vmul.f32 %v116, %v125
    %v133 = vmul.f32 %v120, %v125
    %134 = vset.pattern.permute.xlu0 0
    %135 = vperm.xlu0 %134, %v33
    %v136 = vpop.permute.xlu0 %135
    %138 = vset.pattern.permute.xlu0 0
    %139 = vperm.xlu0 %138, %v34
    %v140 = vpop.permute.xlu0 %139
    %142 = vset.pattern.permute.xlu0 0
    %143 = vperm.xlu0 %142, %v35
    %v144 = vpop.permute.xlu0 %143
    %146 = vset.pattern.permute.xlu0 0
    %147 = vperm.xlu0 %146, %v36
    %v148 = vpop.permute.xlu0 %147
    %150 = vset.pattern.permute.xlu0 0
    %151 = vperm.xlu0 %150, %v37
    %v152 = vpop.permute.xlu0 %151
    %154 = vset.pattern.permute.xlu0 0
    %155 = vperm.xlu0 %154, %v38
    %v156 = vpop.permute.xlu0 %155
    %158 = vset.pattern.permute.xlu0 0
    %159 = vperm.xlu0 %158, %v39
    %v160 = vpop.permute.xlu0 %159
    %162 = vset.pattern.permute.xlu0 0
    %163 = vperm.xlu0 %162, %v40
    %v164 = vpop.permute.xlu0 %163
    %v166 = vlaneseq
    %v167 = vshrl.u32 %v166, 7
    %v168 = vsub.s32 1, %v167
    %v169 = vrot.slane %v87, %v168
    %v170 = vmul.f32 %v136, %v169
    %v171 = vmul.f32 %v140, %v169
    %v172 = vmul.f32 %v144, %v169
    %v173 = vmul.f32 %v148, %v169
    %v174 = vmul.f32 %v152, %v169
    %v175 = vmul.f32 %v156, %v169
    %v176 = vmul.f32 %v160, %v169
    %v177 = vmul.f32 %v164, %v169
    %v178 = vadd.f32 %v126, %v170
    %v179 = vadd.f32 %v127, %v171
    %v180 = vadd.f32 %v128, %v172
    %v181 = vadd.f32 %v129, %v173
    %v182 = vadd.f32 %v130, %v174
    %v183 = vadd.f32 %v131, %v175
    %v184 = vadd.f32 %v132, %v176
    %v185 = vadd.f32 %v133, %v177
    %186 = vset.pattern.permute.xlu0 0
    %187 = vperm.xlu0 %186, %v71
    %v188 = vpop.permute.xlu0 %187
    %190 = vset.pattern.permute.xlu0 0
    %191 = vperm.xlu0 %190, %v73
    %v192 = vpop.permute.xlu0 %191
    %194 = vset.pattern.permute.xlu0 0
    %195 = vperm.xlu0 %194, %v75
    %v196 = vpop.permute.xlu0 %195
    %199 = vset.pattern.permute.xlu0 0
    %200 = vperm.xlu0 %199, %v85
    %v201 = vpop.permute.xlu0 %200
    %203 = vset.pattern.permute.xlu0 0
    %204 = vperm.xlu0 %203, %v78
    %v205 = vpop.permute.xlu0 %204
    %207 = vset.pattern.permute.xlu0 0
    %208 = vperm.xlu0 %207, %v80
    %v209 = vpop.permute.xlu0 %208
    %211 = vset.pattern.permute.xlu0 0
    %212 = vperm.xlu0 %211, %v82
    %v213 = vpop.permute.xlu0 %212
    %216 = vset.pattern.permute.xlu0 0
    %217 = vperm.xlu0 %216, %v86
    %v218 = vpop.permute.xlu0 %217
    %v220 = vlaneseq
    %v221 = vshrl.u32 %v220, 7
    %v222 = vsub.s32 2, %v221
    %v223 = vrot.slane %v87, %v222
    %v224 = vmul.f32 %v188, %v223
    %v225 = vmul.f32 %v192, %v223
    %v226 = vmul.f32 %v196, %v223
    %v227 = vmul.f32 %v201, %v223
    %v228 = vmul.f32 %v205, %v223
    %v229 = vmul.f32 %v209, %v223
    %v230 = vmul.f32 %v213, %v223
    %v231 = vmul.f32 %v218, %v223
    %v232 = vadd.f32 %v178, %v224
    %v233 = vadd.f32 %v179, %v225
    %v234 = vadd.f32 %v180, %v226
    %v235 = vadd.f32 %v181, %v227
    %v236 = vadd.f32 %v182, %v228
    %v237 = vadd.f32 %v183, %v229
    %v238 = vadd.f32 %v184, %v230
    %v239 = vadd.f32 %v185, %v231
    %v240 = vld [vmem:[%s2] sm:$0x1]
    %v242 = vlaneseq
    %v243 = vshrl.u32 %v242, 7
    %v244 = vsub.s32 0, %v243
    %v245 = vrot.slane %v240, %v244
    %v247 = vadd.f32 %v232, %v245
    %v248 = vadd.f32 %v233, %v245
    %v249 = vadd.f32 %v234, %v245
    %v250 = vadd.f32 %v235, %v245
    %v251 = vadd.f32 %v236, %v245
    %v252 = vadd.f32 %v237, %v245
    %v253 = vadd.f32 %v238, %v245
    %v254 = vadd.f32 %v239, %v245
    %vm255 = vcmp.ge.f32.partialorder %v247, 0.0
    %vm256 = vcmp.ge.f32.partialorder %v248, 0.0
    %vm257 = vcmp.ge.f32.partialorder %v249, 0.0
    %vm258 = vcmp.ge.f32.partialorder %v250, 0.0
    %vm259 = vcmp.ge.f32.partialorder %v251, 0.0
    %vm260 = vcmp.ge.f32.partialorder %v252, 0.0
    %vm261 = vcmp.ge.f32.partialorder %v253, 0.0
    %vm262 = vcmp.ge.f32.partialorder %v254, 0.0
    %v263 = vmul.f32 %v247, 0.2
    %v264 = vmul.f32 %v248, 0.2
    %v265 = vmul.f32 %v249, 0.2
    %v266 = vmul.f32 %v250, 0.2
    %v267 = vmul.f32 %v251, 0.2
    %v268 = vmul.f32 %v252, 0.2
    %v269 = vmul.f32 %v253, 0.2
    %v270 = vmul.f32 %v254, 0.2
    %v271 = vsel %vm255, %v247, %v263
    %v272 = vsel %vm256, %v248, %v264
    %v273 = vsel %vm257, %v249, %v265
    %v274 = vsel %vm258, %v250, %v266
    %v275 = vsel %vm259, %v251, %v267
    %v276 = vsel %vm260, %v252, %v268
    %v277 = vsel %vm261, %v253, %v269
    %v278 = vsel %vm262, %v254, %v270
    %v287 = vcombine.high %v271, %v271
    %v289 = vunpack.c.l.s4 1983009808
    %v290 = vunpack.c.0.s8 %v289
    %v291 = vlaneseq
    %v292 = vshrl.u32 %v291, 7
    %v293 = vsub.s32 %v290, %v292
    %v294 = vrot.slane %v271, %v293
    %v296 = vunpack.c.l.s4 1983009808
    %v297 = vunpack.c.0.s8 %v296
    %v298 = vlaneseq
    %v299 = vshrl.u32 %v298, 7
    %v300 = vsub.s32 %v297, %v299
    %v301 = vrot.slane %v287, %v300
    %v302 = vcombine.high %v294, %v294
    %v303 = vcombine.high %v301, %v301
    %v304 = vcombine.high %v272, %v272
    %v306 = vunpack.c.l.s4 1983009808
    %v307 = vunpack.c.0.s8 %v306
    %v308 = vlaneseq
    %v309 = vshrl.u32 %v308, 7
    %v310 = vsub.s32 %v307, %v309
    %v311 = vrot.slane %v272, %v310
    %v313 = vunpack.c.l.s4 1983009808
    %v314 = vunpack.c.0.s8 %v313
    %v315 = vlaneseq
    %v316 = vshrl.u32 %v315, 7
    %v317 = vsub.s32 %v314, %v316
    %v318 = vrot.slane %v304, %v317
    %v319 = vcombine.high %v311, %v311
    %v320 = vcombine.high %v318, %v318
    %v321 = vcombine.high %v273, %v273
    %v323 = vunpack.c.l.s4 1983009808
    %v324 = vunpack.c.0.s8 %v323
    %v325 = vlaneseq
    %v326 = vshrl.u32 %v325, 7
    %v327 = vsub.s32 %v324, %v326
    %v328 = vrot.slane %v273, %v327
    %v330 = vunpack.c.l.s4 1983009808
    %v331 = vunpack.c.0.s8 %v330
    %v332 = vlaneseq
    %v333 = vshrl.u32 %v332, 7
    %v334 = vsub.s32 %v331, %v333
    %v335 = vrot.slane %v321, %v334
    %v336 = vcombine.high %v328, %v328
    %v337 = vcombine.high %v335, %v335
    %v338 = vcombine.high %v274, %v274
    %v340 = vunpack.c.l.s4 1983009808
    %v341 = vunpack.c.0.s8 %v340
    %v342 = vlaneseq
    %v343 = vshrl.u32 %v342, 7
    %v344 = vsub.s32 %v341, %v343
    %v345 = vrot.slane %v274, %v344
    %v347 = vunpack.c.l.s4 1983009808
    %v348 = vunpack.c.0.s8 %v347
    %v349 = vlaneseq
    %v350 = vshrl.u32 %v349, 7
    %v351 = vsub.s32 %v348, %v350
    %v352 = vrot.slane %v338, %v351
    %v353 = vcombine.high %v345, %v345
    %v354 = vcombine.high %v352, %v352
    %v355 = vcombine.high %v275, %v275
    %v357 = vunpack.c.l.s4 1983009808
    %v358 = vunpack.c.0.s8 %v357
    %v359 = vlaneseq
    %v360 = vshrl.u32 %v359, 7
    %v361 = vsub.s32 %v358, %v360
    %v362 = vrot.slane %v275, %v361
    %v364 = vunpack.c.l.s4 1983009808
    %v365 = vunpack.c.0.s8 %v364
    %v366 = vlaneseq
    %v367 = vshrl.u32 %v366, 7
    %v368 = vsub.s32 %v365, %v367
    %v369 = vrot.slane %v355, %v368
    %v370 = vcombine.high %v362, %v362
    %v371 = vcombine.high %v369, %v369
    %v372 = vcombine.high %v276, %v276
    %v374 = vunpack.c.l.s4 1983009808
    %v375 = vunpack.c.0.s8 %v374
    %v376 = vlaneseq
    %v377 = vshrl.u32 %v376, 7
    %v378 = vsub.s32 %v375, %v377
    %v379 = vrot.slane %v276, %v378
    %v381 = vunpack.c.l.s4 1983009808
    %v382 = vunpack.c.0.s8 %v381
    %v383 = vlaneseq
    %v384 = vshrl.u32 %v383, 7
    %v385 = vsub.s32 %v382, %v384
    %v386 = vrot.slane %v372, %v385
    %v387 = vcombine.high %v379, %v379
    %v388 = vcombine.high %v386, %v386
    %v389 = vcombine.high %v277, %v277
    %v391 = vunpack.c.l.s4 1983009808
    %v392 = vunpack.c.0.s8 %v391
    %v393 = vlaneseq
    %v394 = vshrl.u32 %v393, 7
    %v395 = vsub.s32 %v392, %v394
    %v396 = vrot.slane %v277, %v395
    %v398 = vunpack.c.l.s4 1983009808
    %v399 = vunpack.c.0.s8 %v398
    %v400 = vlaneseq
    %v401 = vshrl.u32 %v400, 7
    %v402 = vsub.s32 %v399, %v401
    %v403 = vrot.slane %v389, %v402
    %v404 = vcombine.high %v396, %v396
    %v405 = vcombine.high %v403, %v403
    %v406 = vcombine.high %v278, %v278
    %v408 = vunpack.c.l.s4 1983009808
    %v409 = vunpack.c.0.s8 %v408
    %v410 = vlaneseq
    %v411 = vshrl.u32 %v410, 7
    %v412 = vsub.s32 %v409, %v411
    %v413 = vrot.slane %v278, %v412
    %v415 = vunpack.c.l.s4 1983009808
    %v416 = vunpack.c.0.s8 %v415
    %v417 = vlaneseq
    %v418 = vshrl.u32 %v417, 7
    %v419 = vsub.s32 %v416, %v418
    %v420 = vrot.slane %v406, %v419
    %v421 = vcombine.high %v413, %v413
    %v422 = vcombine.high %v420, %v420
    %vm455 = vcmask 123904
    %v456 = vsel %vm455, %v294, -inf
    %v457 = vrot.slane %v456, 4
    %v458 = vmax.f32 %v456, %v457
    %v459 = vrot.slane %v458, 2
    %v460 = vmax.f32 %v458, %v459
    %v461 = vrot.slane %v460, 1
    %v462 = vmax.f32 %v460, %v461
    %v463 = vsel %vm455, %v302, -inf
    %v464 = vrot.slane %v463, 4
    %v465 = vmax.f32 %v463, %v464
    %v466 = vrot.slane %v465, 2
    %v467 = vmax.f32 %v465, %v466
    %v468 = vrot.slane %v467, 1
    %v469 = vmax.f32 %v467, %v468
    %v470 = vsel %vm455, %v301, -inf
    %v471 = vrot.slane %v470, 4
    %v472 = vmax.f32 %v470, %v471
    %v473 = vrot.slane %v472, 2
    %v474 = vmax.f32 %v472, %v473
    %v475 = vrot.slane %v474, 1
    %v476 = vmax.f32 %v474, %v475
    %v477 = vsel %vm455, %v303, -inf
    %v478 = vrot.slane %v477, 4
    %v479 = vmax.f32 %v477, %v478
    %v480 = vrot.slane %v479, 2
    %v481 = vmax.f32 %v479, %v480
    %v482 = vrot.slane %v481, 1
    %v483 = vmax.f32 %v481, %v482
    %v484 = vsel %vm455, %v311, -inf
    %v485 = vrot.slane %v484, 4
    %v486 = vmax.f32 %v484, %v485
    %v487 = vrot.slane %v486, 2
    %v488 = vmax.f32 %v486, %v487
    %v489 = vrot.slane %v488, 1
    %v490 = vmax.f32 %v488, %v489
    %v491 = vsel %vm455, %v319, -inf
    %v492 = vrot.slane %v491, 4
    %v493 = vmax.f32 %v491, %v492
    %v494 = vrot.slane %v493, 2
    %v495 = vmax.f32 %v493, %v494
    %v496 = vrot.slane %v495, 1
    %v497 = vmax.f32 %v495, %v496
    %v498 = vsel %vm455, %v318, -inf
    %v499 = vrot.slane %v498, 4
    %v500 = vmax.f32 %v498, %v499
    %v501 = vrot.slane %v500, 2
    %v502 = vmax.f32 %v500, %v501
    %v503 = vrot.slane %v502, 1
    %v504 = vmax.f32 %v502, %v503
    %v505 = vsel %vm455, %v320, -inf
    %v506 = vrot.slane %v505, 4
    %v507 = vmax.f32 %v505, %v506
    %v508 = vrot.slane %v507, 2
    %v509 = vmax.f32 %v507, %v508
    %v510 = vrot.slane %v509, 1
    %v511 = vmax.f32 %v509, %v510
    %v512 = vsel %vm455, %v328, -inf
    %v513 = vrot.slane %v512, 4
    %v514 = vmax.f32 %v512, %v513
    %v515 = vrot.slane %v514, 2
    %v516 = vmax.f32 %v514, %v515
    %v517 = vrot.slane %v516, 1
    %v518 = vmax.f32 %v516, %v517
    %v519 = vsel %vm455, %v336, -inf
    %v520 = vrot.slane %v519, 4
    %v521 = vmax.f32 %v519, %v520
    %v522 = vrot.slane %v521, 2
    %v523 = vmax.f32 %v521, %v522
    %v524 = vrot.slane %v523, 1
    %v525 = vmax.f32 %v523, %v524
    %v526 = vsel %vm455, %v335, -inf
    %v527 = vrot.slane %v526, 4
    %v528 = vmax.f32 %v526, %v527
    %v529 = vrot.slane %v528, 2
    %v530 = vmax.f32 %v528, %v529
    %v531 = vrot.slane %v530, 1
    %v532 = vmax.f32 %v530, %v531
    %v533 = vsel %vm455, %v337, -inf
    %v534 = vrot.slane %v533, 4
    %v535 = vmax.f32 %v533, %v534
    %v536 = vrot.slane %v535, 2
    %v537 = vmax.f32 %v535, %v536
    %v538 = vrot.slane %v537, 1
    %v539 = vmax.f32 %v537, %v538
    %v540 = vsel %vm455, %v345, -inf
    %v541 = vrot.slane %v540, 4
    %v542 = vmax.f32 %v540, %v541
    %v543 = vrot.slane %v542, 2
    %v544 = vmax.f32 %v542, %v543
    %v545 = vrot.slane %v544, 1
    %v546 = vmax.f32 %v544, %v545
    %v547 = vsel %vm455, %v353, -inf
    %v548 = vrot.slane %v547, 4
    %v549 = vmax.f32 %v547, %v548
    %v550 = vrot.slane %v549, 2
    %v551 = vmax.f32 %v549, %v550
    %v552 = vrot.slane %v551, 1
    %v553 = vmax.f32 %v551, %v552
    %v554 = vsel %vm455, %v352, -inf
    %v555 = vrot.slane %v554, 4
    %v556 = vmax.f32 %v554, %v555
    %v557 = vrot.slane %v556, 2
    %v558 = vmax.f32 %v556, %v557
    %v559 = vrot.slane %v558, 1
    %v560 = vmax.f32 %v558, %v559
    %v561 = vsel %vm455, %v354, -inf
    %v562 = vrot.slane %v561, 4
    %v563 = vmax.f32 %v561, %v562
    %v564 = vrot.slane %v563, 2
    %v565 = vmax.f32 %v563, %v564
    %v566 = vrot.slane %v565, 1
    %v567 = vmax.f32 %v565, %v566
    %v568 = vsel %vm455, %v362, -inf
    %v569 = vrot.slane %v568, 4
    %v570 = vmax.f32 %v568, %v569
    %v571 = vrot.slane %v570, 2
    %v572 = vmax.f32 %v570, %v571
    %v573 = vrot.slane %v572, 1
    %v574 = vmax.f32 %v572, %v573
    %v575 = vsel %vm455, %v370, -inf
    %v576 = vrot.slane %v575, 4
    %v577 = vmax.f32 %v575, %v576
    %v578 = vrot.slane %v577, 2
    %v579 = vmax.f32 %v577, %v578
    %v580 = vrot.slane %v579, 1
    %v581 = vmax.f32 %v579, %v580
    %v582 = vsel %vm455, %v369, -inf
    %v583 = vrot.slane %v582, 4
    %v584 = vmax.f32 %v582, %v583
    %v585 = vrot.slane %v584, 2
    %v586 = vmax.f32 %v584, %v585
    %v587 = vrot.slane %v586, 1
    %v588 = vmax.f32 %v586, %v587
    %v589 = vsel %vm455, %v371, -inf
    %v590 = vrot.slane %v589, 4
    %v591 = vmax.f32 %v589, %v590
    %v592 = vrot.slane %v591, 2
    %v593 = vmax.f32 %v591, %v592
    %v594 = vrot.slane %v593, 1
    %v595 = vmax.f32 %v593, %v594
    %v596 = vsel %vm455, %v379, -inf
    %v597 = vrot.slane %v596, 4
    %v598 = vmax.f32 %v596, %v597
    %v599 = vrot.slane %v598, 2
    %v600 = vmax.f32 %v598, %v599
    %v601 = vrot.slane %v600, 1
    %v602 = vmax.f32 %v600, %v601
    %v603 = vsel %vm455, %v387, -inf
    %v604 = vrot.slane %v603, 4
    %v605 = vmax.f32 %v603, %v604
    %v606 = vrot.slane %v605, 2
    %v607 = vmax.f32 %v605, %v606
    %v608 = vrot.slane %v607, 1
    %v609 = vmax.f32 %v607, %v608
    %v610 = vsel %vm455, %v386, -inf
    %v611 = vrot.slane %v610, 4
    %v612 = vmax.f32 %v610, %v611
    %v613 = vrot.slane %v612, 2
    %v614 = vmax.f32 %v612, %v613
    %v615 = vrot.slane %v614, 1
    %v616 = vmax.f32 %v614, %v615
    %v617 = vsel %vm455, %v388, -inf
    %v618 = vrot.slane %v617, 4
    %v619 = vmax.f32 %v617, %v618
    %v620 = vrot.slane %v619, 2
    %v621 = vmax.f32 %v619, %v620
    %v622 = vrot.slane %v621, 1
    %v623 = vmax.f32 %v621, %v622
    %v624 = vsel %vm455, %v396, -inf
    %v625 = vrot.slane %v624, 4
    %v626 = vmax.f32 %v624, %v625
    %v627 = vrot.slane %v626, 2
    %v628 = vmax.f32 %v626, %v627
    %v629 = vrot.slane %v628, 1
    %v630 = vmax.f32 %v628, %v629
    %v631 = vsel %vm455, %v404, -inf
    %v632 = vrot.slane %v631, 4
    %v633 = vmax.f32 %v631, %v632
    %v634 = vrot.slane %v633, 2
    %v635 = vmax.f32 %v633, %v634
    %v636 = vrot.slane %v635, 1
    %v637 = vmax.f32 %v635, %v636
    %v638 = vsel %vm455, %v403, -inf
    %v639 = vrot.slane %v638, 4
    %v640 = vmax.f32 %v638, %v639
    %v641 = vrot.slane %v640, 2
    %v642 = vmax.f32 %v640, %v641
    %v643 = vrot.slane %v642, 1
    %v644 = vmax.f32 %v642, %v643
    %v645 = vsel %vm455, %v405, -inf
    %v646 = vrot.slane %v645, 4
    %v647 = vmax.f32 %v645, %v646
    %v648 = vrot.slane %v647, 2
    %v649 = vmax.f32 %v647, %v648
    %v650 = vrot.slane %v649, 1
    %v651 = vmax.f32 %v649, %v650
    %v652 = vsel %vm455, %v413, -inf
    %v653 = vrot.slane %v652, 4
    %v654 = vmax.f32 %v652, %v653
    %v655 = vrot.slane %v654, 2
    %v656 = vmax.f32 %v654, %v655
    %v657 = vrot.slane %v656, 1
    %v658 = vmax.f32 %v656, %v657
    %v659 = vsel %vm455, %v421, -inf
    %v660 = vrot.slane %v659, 4
    %v661 = vmax.f32 %v659, %v660
    %v662 = vrot.slane %v661, 2
    %v663 = vmax.f32 %v661, %v662
    %v664 = vrot.slane %v663, 1
    %v665 = vmax.f32 %v663, %v664
    %v666 = vsel %vm455, %v420, -inf
    %v667 = vrot.slane %v666, 4
    %v668 = vmax.f32 %v666, %v667
    %v669 = vrot.slane %v668, 2
    %v670 = vmax.f32 %v668, %v669
    %v671 = vrot.slane %v670, 1
    %v672 = vmax.f32 %v670, %v671
    %v673 = vsel %vm455, %v422, -inf
    %v674 = vrot.slane %v673, 4
    %v675 = vmax.f32 %v673, %v674
    %v676 = vrot.slane %v675, 2
    %v677 = vmax.f32 %v675, %v676
    %v678 = vrot.slane %v677, 1
    %v679 = vmax.f32 %v677, %v678
    %vm710 = vcmask 1042434
    %v711 = vsel %vm710, %v469, %v462
    %vm712 = vcmask 1043459
    %v713 = vsel %vm712, %v476, %v711
    %vm714 = vcmask 1044484
    %v715 = vsel %vm714, %v483, %v713
    %vm716 = vcmask 1045509
    %v717 = vsel %vm716, %v490, %v715
    %vm718 = vcmask 1046534
    %v719 = vsel %vm718, %v497, %v717
    %vm720 = vcmask 1047559
    %v721 = vsel %vm720, %v504, %v719
    %vm722 = vcmask 1041409
    %v723 = vsel %vm722, %v518, %v511
    %v724 = vsel %vm710, %v525, %v723
    %v725 = vsel %vm712, %v532, %v724
    %v726 = vsel %vm714, %v539, %v725
    %v727 = vsel %vm716, %v546, %v726
    %v728 = vsel %vm718, %v553, %v727
    %v729 = vsel %vm720, %v560, %v728
    %v730 = vsel %vm710, %v581, %v574
    %v731 = vsel %vm712, %v588, %v730
    %v732 = vsel %vm714, %v595, %v731
    %v733 = vsel %vm716, %v602, %v732
    %v734 = vsel %vm718, %v609, %v733
    %v735 = vsel %vm720, %v616, %v734
    %v736 = vsel %vm722, %v630, %v623
    %v737 = vsel %vm710, %v637, %v736
    %v738 = vsel %vm712, %v644, %v737
    %v739 = vsel %vm714, %v651, %v738
    %v740 = vsel %vm716, %v658, %v739
    %v741 = vsel %vm718, %v665, %v740
    %v742 = vsel %vm720, %v672, %v741
    %v745 = vsel %vm49, 0.0, %v721
    %v746 = vsel %vm49, 0.0, %v735
    %v749 = vsel %vm722, %v476, %v469
    %v750 = vsel %vm710, %v483, %v749
    %v751 = vsel %vm712, %v490, %v750
    %v752 = vsel %vm714, %v497, %v751
    %v753 = vsel %vm716, %v504, %v752
    %v754 = vsel %vm718, %v511, %v753
    %v755 = vsel %vm720, %v518, %v754
    %v756 = vsel %vm722, %v532, %v525
    %v757 = vsel %vm710, %v539, %v756
    %v758 = vsel %vm712, %v546, %v757
    %v759 = vsel %vm714, %v553, %v758
    %v760 = vsel %vm716, %v560, %v759
    %v761 = vsel %vm718, %v567, %v760
    %v762 = vsel %vm722, %v588, %v581
    %v763 = vsel %vm710, %v595, %v762
    %v764 = vsel %vm712, %v602, %v763
    %v765 = vsel %vm714, %v609, %v764
    %v766 = vsel %vm716, %v616, %v765
    %v767 = vsel %vm718, %v623, %v766
    %v768 = vsel %vm720, %v630, %v767
    %v769 = vsel %vm722, %v644, %v637
    %v770 = vsel %vm710, %v651, %v769
    %v771 = vsel %vm712, %v658, %v770
    %v772 = vsel %vm714, %v665, %v771
    %v773 = vsel %vm716, %v672, %v772
    %v774 = vsel %vm718, %v679, %v773
    %v777 = vsel %vm68, %v761, 0.0
    %v778 = vsel %vm68, %v774, 0.0
    %v779 = vld [vmem:[%s3] sm:$0xff]
    %v780 = vld [vmem:[%s3 + $0x8] sm:$0xff]
    %s781 = scalar_lea.vmem %s3, 16
    %v782 = vld [vmem:[%s781] sm:$0xff]
    %v783 = vld [vmem:[%s781 + $0x8] sm:$0xff]
    %v784 = vsel %vm722, %v469, %v462
    %v785 = vsel %vm710, %v476, %v784
    %v786 = vsel %vm712, %v483, %v785
    %v787 = vsel %vm714, %v490, %v786
    %v788 = vsel %vm716, %v497, %v787
    %v789 = vsel %vm718, %v504, %v788
    %v790 = vsel %vm720, %v511, %v789
    %v791 = vsel %vm722, %v525, %v518
    %v792 = vsel %vm710, %v532, %v791
    %v793 = vsel %vm712, %v539, %v792
    %v794 = vsel %vm714, %v546, %v793
    %v795 = vsel %vm716, %v553, %v794
    %v796 = vsel %vm718, %v560, %v795
    %v797 = vsel %vm720, %v567, %v796
    %v798 = vsel %vm722, %v581, %v574
    %v799 = vsel %vm710, %v588, %v798
    %v800 = vsel %vm712, %v595, %v799
    %v801 = vsel %vm714, %v602, %v800
    %v802 = vsel %vm716, %v609, %v801
    %v803 = vsel %vm718, %v616, %v802
    %v804 = vsel %vm720, %v623, %v803
    %v805 = vsel %vm722, %v637, %v630
    %v806 = vsel %vm710, %v644, %v805
    %v807 = vsel %vm712, %v651, %v806
    %v808 = vsel %vm714, %v658, %v807
    %v809 = vsel %vm716, %v665, %v808
    %v810 = vsel %vm718, %v672, %v809
    %v811 = vsel %vm720, %v679, %v810
    %vm812 = vcmask 130048
    %v813 = vsel %vm812, %v790, 0
    %v815 = vsel %vm812, %v797, 0
    %v817 = vsel %vm812, %v804, 0
    %v819 = vsel %vm812, %v811, 0
    %821 = vmatprep.subr.mxu0 0.0
    %822 = vmatpush1.msra.mxu0 %v782
    %823 = vmatprep.subr.mxu0 0.0
    %824 = vmatpush1.msra.mxu0 %v783
    %825 = vmatprep.subr.mxu0 0.0
    %826 = vmatpush1.msra.mxu0 0.0
    %827 = vmatprep.subr.mxu0 0.0
    %828 = vmatpush1.msra.mxu0 0.0
    %829 = vmatprep.subr.mxu0 0.0
    %830 = vmatpush1.msra.mxu0 0.0
    %831 = vmatprep.subr.mxu0 0.0
    %832 = vmatpush1.msra.mxu0 0.0
    %833 = vmatprep.subr.mxu0 0.0
    %834 = vmatpush1.msra.mxu0 0.0
    %835 = vmatprep.subr.mxu0 0.0
    %836 = vmatpush1.msra.mxu0 0.0
    %837 = vmatprep.subr.mxu0 0.0
    %838 = vmatpush1.msra.mxu0 0.0
    %839 = vmatprep.subr.mxu0 0.0
    %840 = vmatpush1.msra.mxu0 0.0
    %841 = vmatprep.subr.mxu0 0.0
    %842 = vmatpush1.msra.mxu0 0.0
    %843 = vmatprep.subr.mxu0 0.0
    %844 = vmatpush1.msra.mxu0 0.0
    %845 = vmatprep.subr.mxu0 0.0
    %846 = vmatpush1.msra.mxu0 0.0
    %847 = vmatprep.subr.mxu0 0.0
    %848 = vmatpush1.msra.mxu0 0.0
    %849 = vmatprep.subr.mxu0 0.0
    %850 = vmatpush1.msra.mxu0 0.0
    %851 = vmatprep.subr.mxu0 0.0
    %852 = vmatpush1.msra.mxu0 0.0
    %853 = vmatprep.subr.mxu0 0.0
    %854 = vmatpush1.msra.mxu0 0.0
    %855 = vmatprep.subr.mxu0 0.0
    %856 = vmatpush1.msra.mxu0 0.0
    %857 = vmatprep.subr.mxu0 0.0
    %858 = vmatpush1.msra.mxu0 0.0
    %859 = vmatprep.subr.mxu0 0.0
    %860 = vmatpush1.msra.mxu0 0.0
    %861 = vmatprep.subr.mxu0 0.0
    %862 = vmatpush1.msra.mxu0 0.0
    %863 = vmatprep.subr.mxu0 0.0
    %864 = vmatpush1.msra.mxu0 0.0
    %865 = vmatprep.subr.mxu0 0.0
    %866 = vmatpush1.msra.mxu0 0.0
    %867 = vmatprep.subr.mxu0 0.0
    %868 = vmatpush1.msra.mxu0 0.0
    %869 = vmatprep.subr.mxu0 0.0
    %870 = vmatpush1.msra.mxu0 0.0
    %871 = vmatprep.subr.mxu0 0.0
    %872 = vmatpush1.msra.mxu0 0.0
    %873 = vmatprep.subr.mxu0 0.0
    %874 = vmatpush1.msra.mxu0 0.0
    %875 = vmatprep.subr.mxu0 0.0
    %876 = vmatpush1.msra.mxu0 0.0
    %877 = vmatprep.subr.mxu0 0.0
    %878 = vmatpush1.msra.mxu0 0.0
    %879 = vmatprep.subr.mxu0 0.0
    %880 = vmatpush1.msra.mxu0 0.0
    %881 = vmatprep.subr.mxu0 0.0
    %882 = vmatpush1.msra.mxu0 0.0
    %883 = vmatprep.subr.mxu0 0.0
    %884 = vmatpush1.msra.mxu0 0.0
    %885 = vmatprep.mubr.f32.mxu0 0.0
    %886 = vmatmul.mubr.f32.gmra.mrb[0].mxu0 %v813
    %v887 = vpop.f32.mrb[0].mxu0
    %v888 = vadd.f32 0.0, %v887
    %v889 = vpop.f32.mrb[0].mxu0
    %890 = vmatprep.mubr.f32.mxu0 0.0
    %891 = vmatmul.mubr.f32.gmra.mrb[0].mxu0 %v815
    %v892 = vpop.f32.mrb[0].mxu0
    %v893 = vadd.f32 0.0, %v892
    %v894 = vpop.f32.mrb[0].mxu0
    %895 = vmatprep.mubr.f32.mxu0 0.0
    %896 = vmatmul.mubr.f32.gmra.mrb[0].mxu0 %v817
    %v897 = vpop.f32.mrb[0].mxu0
    %v898 = vadd.f32 0.0, %v897
    %v899 = vpop.f32.mrb[0].mxu0
    %900 = vmatprep.mubr.f32.mxu0 0.0
    %901 = vmatmul.mubr.f32.gmra.mrb[0].mxu0 %v819
    %v902 = vpop.f32.mrb[0].mxu0
    %v903 = vadd.f32 0.0, %v902
    %v904 = vpop.f32.mrb[0].mxu0
    %905 = vdwg.mxu0
    %v907 = vsel %vm812, %v745, 0
    %v909 = vsel %vm812, %v729, 0
    %v912 = vsel %vm812, %v746, 0
    %v914 = vsel %vm812, %v742, 0
    %916 = vmatprep.subr.mxu0 0.0
    %917 = vmatpush1.msra.mxu0 %v779
    %918 = vmatprep.subr.mxu0 0.0
    %919 = vmatpush1.msra.mxu0 %v780
    %920 = vmatprep.subr.mxu0 0.0
    %921 = vmatpush1.msra.mxu0 0.0
    %922 = vmatprep.subr.mxu0 0.0
    %923 = vmatpush1.msra.mxu0 0.0
    %924 = vmatprep.subr.mxu0 0.0
    %925 = vmatpush1.msra.mxu0 0.0
    %926 = vmatprep.subr.mxu0 0.0
    %927 = vmatpush1.msra.mxu0 0.0
    %928 = vmatprep.subr.mxu0 0.0
    %929 = vmatpush1.msra.mxu0 0.0
    %930 = vmatprep.subr.mxu0 0.0
    %931 = vmatpush1.msra.mxu0 0.0
    %932 = vmatprep.subr.mxu0 0.0
    %933 = vmatpush1.msra.mxu0 0.0
    %934 = vmatprep.subr.mxu0 0.0
    %935 = vmatpush1.msra.mxu0 0.0
    %936 = vmatprep.subr.mxu0 0.0
    %937 = vmatpush1.msra.mxu0 0.0
    %938 = vmatprep.subr.mxu0 0.0
    %939 = vmatpush1.msra.mxu0 0.0
    %940 = vmatprep.subr.mxu0 0.0
    %941 = vmatpush1.msra.mxu0 0.0
    %942 = vmatprep.subr.mxu0 0.0
    %943 = vmatpush1.msra.mxu0 0.0
    %944 = vmatprep.subr.mxu0 0.0
    %945 = vmatpush1.msra.mxu0 0.0
    %946 = vmatprep.subr.mxu0 0.0
    %947 = vmatpush1.msra.mxu0 0.0
    %948 = vmatprep.subr.mxu0 0.0
    %949 = vmatpush1.msra.mxu0 0.0
    %950 = vmatprep.subr.mxu0 0.0
    %951 = vmatpush1.msra.mxu0 0.0
    %952 = vmatprep.subr.mxu0 0.0
    %953 = vmatpush1.msra.mxu0 0.0
    %954 = vmatprep.subr.mxu0 0.0
    %955 = vmatpush1.msra.mxu0 0.0
    %956 = vmatprep.subr.mxu0 0.0
    %957 = vmatpush1.msra.mxu0 0.0
    %958 = vmatprep.subr.mxu0 0.0
    %959 = vmatpush1.msra.mxu0 0.0
    %960 = vmatprep.subr.mxu0 0.0
    %961 = vmatpush1.msra.mxu0 0.0
    %962 = vmatprep.subr.mxu0 0.0
    %963 = vmatpush1.msra.mxu0 0.0
    %964 = vmatprep.subr.mxu0 0.0
    %965 = vmatpush1.msra.mxu0 0.0
    %966 = vmatprep.subr.mxu0 0.0
    %967 = vmatpush1.msra.mxu0 0.0
    %968 = vmatprep.subr.mxu0 0.0
    %969 = vmatpush1.msra.mxu0 0.0
    %970 = vmatprep.subr.mxu0 0.0
    %971 = vmatpush1.msra.mxu0 0.0
    %972 = vmatprep.subr.mxu0 0.0
    %973 = vmatpush1.msra.mxu0 0.0
    %974 = vmatprep.subr.mxu0 0.0
    %975 = vmatpush1.msra.mxu0 0.0
    %976 = vmatprep.subr.mxu0 0.0
    %977 = vmatpush1.msra.mxu0 0.0
    %978 = vmatprep.subr.mxu0 0.0
    %979 = vmatpush1.msra.mxu0 0.0
    %980 = vmatprep.mubr.f32.mxu0 0.0
    %981 = vmatmul.mubr.f32.gmra.mrb[0].mxu0 %v907
    %v982 = vpop.f32.mrb[0].mxu0
    %v983 = vadd.f32 %v888, %v982
    %v984 = vpop.f32.mrb[0].mxu0
    %985 = vmatprep.mubr.f32.mxu0 0.0
    %986 = vmatmul.mubr.f32.gmra.mrb[0].mxu0 %v909
    %v987 = vpop.f32.mrb[0].mxu0
    %v988 = vadd.f32 %v893, %v987
    %v989 = vpop.f32.mrb[0].mxu0
    %990 = vmatprep.mubr.f32.mxu0 0.0
    %991 = vmatmul.mubr.f32.gmra.mrb[0].mxu0 %v912
    %v992 = vpop.f32.mrb[0].mxu0
    %v993 = vadd.f32 %v898, %v992
    %v994 = vpop.f32.mrb[0].mxu0
    %995 = vmatprep.mubr.f32.mxu0 0.0
    %996 = vmatmul.mubr.f32.gmra.mrb[0].mxu0 %v914
    %v997 = vpop.f32.mrb[0].mxu0
    %v998 = vadd.f32 %v903, %v997
    %v999 = vpop.f32.mrb[0].mxu0
    %1000 = vdwg.mxu0
    %s1001 = scalar_lea.vmem %s3, 32
    %v1002 = vld [vmem:[%s1001] sm:$0xff]
    %v1003 = vld [vmem:[%s1001 + $0x8] sm:$0xff]
    %v1004 = vsel %vm812, %v755, 0
    %v1007 = vsel %vm812, %v777, 0
    %v1009 = vsel %vm812, %v768, 0
    %v1012 = vsel %vm812, %v778, 0
    %1014 = vmatprep.subr.mxu0 0.0
    %1015 = vmatpush1.msra.mxu0 %v1002
    %1016 = vmatprep.subr.mxu0 0.0
    %1017 = vmatpush1.msra.mxu0 %v1003
    %1018 = vmatprep.subr.mxu0 0.0
    %1019 = vmatpush1.msra.mxu0 0.0
    %1020 = vmatprep.subr.mxu0 0.0
    %1021 = vmatpush1.msra.mxu0 0.0
    %1022 = vmatprep.subr.mxu0 0.0
    %1023 = vmatpush1.msra.mxu0 0.0
    %1024 = vmatprep.subr.mxu0 0.0
    %1025 = vmatpush1.msra.mxu0 0.0
    %1026 = vmatprep.subr.mxu0 0.0
    %1027 = vmatpush1.msra.mxu0 0.0
    %1028 = vmatprep.subr.mxu0 0.0
    %1029 = vmatpush1.msra.mxu0 0.0
    %1030 = vmatprep.subr.mxu0 0.0
    %1031 = vmatpush1.msra.mxu0 0.0
    %1032 = vmatprep.subr.mxu0 0.0
    %1033 = vmatpush1.msra.mxu0 0.0
    %1034 = vmatprep.subr.mxu0 0.0
    %1035 = vmatpush1.msra.mxu0 0.0
    %1036 = vmatprep.subr.mxu0 0.0
    %1037 = vmatpush1.msra.mxu0 0.0
    %1038 = vmatprep.subr.mxu0 0.0
    %1039 = vmatpush1.msra.mxu0 0.0
    %1040 = vmatprep.subr.mxu0 0.0
    %1041 = vmatpush1.msra.mxu0 0.0
    %1042 = vmatprep.subr.mxu0 0.0
    %1043 = vmatpush1.msra.mxu0 0.0
    %1044 = vmatprep.subr.mxu0 0.0
    %1045 = vmatpush1.msra.mxu0 0.0
    %1046 = vmatprep.subr.mxu0 0.0
    %1047 = vmatpush1.msra.mxu0 0.0
    %1048 = vmatprep.subr.mxu0 0.0
    %1049 = vmatpush1.msra.mxu0 0.0
    %1050 = vmatprep.subr.mxu0 0.0
    %1051 = vmatpush1.msra.mxu0 0.0
    %1052 = vmatprep.subr.mxu0 0.0
    %1053 = vmatpush1.msra.mxu0 0.0
    %1054 = vmatprep.subr.mxu0 0.0
    %1055 = vmatpush1.msra.mxu0 0.0
    %1056 = vmatprep.subr.mxu0 0.0
    %1057 = vmatpush1.msra.mxu0 0.0
    %1058 = vmatprep.subr.mxu0 0.0
    %1059 = vmatpush1.msra.mxu0 0.0
    %1060 = vmatprep.subr.mxu0 0.0
    %1061 = vmatpush1.msra.mxu0 0.0
    %1062 = vmatprep.subr.mxu0 0.0
    %1063 = vmatpush1.msra.mxu0 0.0
    %1064 = vmatprep.subr.mxu0 0.0
    %1065 = vmatpush1.msra.mxu0 0.0
    %1066 = vmatprep.subr.mxu0 0.0
    %1067 = vmatpush1.msra.mxu0 0.0
    %1068 = vmatprep.subr.mxu0 0.0
    %1069 = vmatpush1.msra.mxu0 0.0
    %1070 = vmatprep.subr.mxu0 0.0
    %1071 = vmatpush1.msra.mxu0 0.0
    %1072 = vmatprep.subr.mxu0 0.0
    %1073 = vmatpush1.msra.mxu0 0.0
    %1074 = vmatprep.subr.mxu0 0.0
    %1075 = vmatpush1.msra.mxu0 0.0
    %1076 = vmatprep.subr.mxu0 0.0
    %1077 = vmatpush1.msra.mxu0 0.0
    %1078 = vmatprep.mubr.f32.mxu0 0.0
    %1079 = vmatmul.mubr.f32.gmra.mrb[0].mxu0 %v1004
    %v1080 = vpop.f32.mrb[0].mxu0
    %v1081 = vadd.f32 0.0, %v1080
    %v1082 = vpop.f32.mrb[0].mxu0
    %1083 = vmatprep.mubr.f32.mxu0 0.0
    %1084 = vmatmul.mubr.f32.gmra.mrb[0].mxu0 %v1007
    %v1085 = vpop.f32.mrb[0].mxu0
    %v1086 = vadd.f32 0.0, %v1085
    %v1087 = vpop.f32.mrb[0].mxu0
    %1088 = vmatprep.mubr.f32.mxu0 0.0
    %1089 = vmatmul.mubr.f32.gmra.mrb[0].mxu0 %v1009
    %v1090 = vpop.f32.mrb[0].mxu0
    %v1091 = vadd.f32 0.0, %v1090
    %v1092 = vpop.f32.mrb[0].mxu0
    %1093 = vmatprep.mubr.f32.mxu0 0.0
    %1094 = vmatmul.mubr.f32.gmra.mrb[0].mxu0 %v1012
    %v1095 = vpop.f32.mrb[0].mxu0
    %v1096 = vadd.f32 0.0, %v1095
    %v1097 = vpop.f32.mrb[0].mxu0
    %1098 = vdwg.mxu0
    %v1099 = vadd.f32 %v983, %v1081
    %v1100 = vadd.f32 %v988, %v1086
    %v1101 = vadd.f32 %v993, %v1091
    %v1102 = vadd.f32 %v998, %v1096
    %v1103 = vld [vmem:[%s4] sm:$0x1]
    %v1105 = vlaneseq
    %v1106 = vshrl.u32 %v1105, 7
    %v1107 = vsub.s32 0, %v1106
    %v1108 = vrot.slane %v1103, %v1107
    %v1110 = vadd.f32 %v1099, %v1108
    %v1111 = vadd.f32 %v1100, %v1108
    %v1112 = vadd.f32 %v1101, %v1108
    %v1113 = vadd.f32 %v1102, %v1108
    %vm1114 = vcmp.ge.f32.partialorder %v1110, 0.0
    %vm1115 = vcmp.ge.f32.partialorder %v1111, 0.0
    %vm1116 = vcmp.ge.f32.partialorder %v1112, 0.0
    %vm1117 = vcmp.ge.f32.partialorder %v1113, 0.0
    %v1118 = vmul.f32 %v1110, 0.2
    %v1119 = vmul.f32 %v1111, 0.2
    %v1120 = vmul.f32 %v1112, 0.2
    %v1121 = vmul.f32 %v1113, 0.2
    %v1122 = vsel %vm1114, %v1110, %v1118
    %v1123 = vsel %vm1115, %v1111, %v1119
    %v1124 = vsel %vm1116, %v1112, %v1120
    %v1125 = vsel %vm1117, %v1113, %v1121
    %v1130 = vcombine.high %v1122, %v1122
    %v1132 = vunpack.c.l.s4 1983009808
    %v1133 = vunpack.c.0.s8 %v1132
    %v1134 = vlaneseq
    %v1135 = vshrl.u32 %v1134, 7
    %v1136 = vsub.s32 %v1133, %v1135
    %v1137 = vrot.slane %v1122, %v1136
    %v1139 = vunpack.c.l.s4 1983009808
    %v1140 = vunpack.c.0.s8 %v1139
    %v1141 = vlaneseq
    %v1142 = vshrl.u32 %v1141, 7
    %v1143 = vsub.s32 %v1140, %v1142
    %v1144 = vrot.slane %v1130, %v1143
    %v1145 = vcombine.high %v1137, %v1137
    %v1146 = vcombine.high %v1144, %v1144
    %v1147 = vcombine.high %v1123, %v1123
    %v1149 = vunpack.c.l.s4 1983009808
    %v1150 = vunpack.c.0.s8 %v1149
    %v1151 = vlaneseq
    %v1152 = vshrl.u32 %v1151, 7
    %v1153 = vsub.s32 %v1150, %v1152
    %v1154 = vrot.slane %v1123, %v1153
    %v1156 = vunpack.c.l.s4 1983009808
    %v1157 = vunpack.c.0.s8 %v1156
    %v1158 = vlaneseq
    %v1159 = vshrl.u32 %v1158, 7
    %v1160 = vsub.s32 %v1157, %v1159
    %v1161 = vrot.slane %v1147, %v1160
    %v1162 = vcombine.high %v1154, %v1154
    %v1163 = vcombine.high %v1161, %v1161
    %v1164 = vcombine.high %v1124, %v1124
    %v1166 = vunpack.c.l.s4 1983009808
    %v1167 = vunpack.c.0.s8 %v1166
    %v1168 = vlaneseq
    %v1169 = vshrl.u32 %v1168, 7
    %v1170 = vsub.s32 %v1167, %v1169
    %v1171 = vrot.slane %v1124, %v1170
    %v1173 = vunpack.c.l.s4 1983009808
    %v1174 = vunpack.c.0.s8 %v1173
    %v1175 = vlaneseq
    %v1176 = vshrl.u32 %v1175, 7
    %v1177 = vsub.s32 %v1174, %v1176
    %v1178 = vrot.slane %v1164, %v1177
    %v1179 = vcombine.high %v1171, %v1171
    %v1180 = vcombine.high %v1178, %v1178
    %v1181 = vcombine.high %v1125, %v1125
    %v1183 = vunpack.c.l.s4 1983009808
    %v1184 = vunpack.c.0.s8 %v1183
    %v1185 = vlaneseq
    %v1186 = vshrl.u32 %v1185, 7
    %v1187 = vsub.s32 %v1184, %v1186
    %v1188 = vrot.slane %v1125, %v1187
    %v1190 = vunpack.c.l.s4 1983009808
    %v1191 = vunpack.c.0.s8 %v1190
    %v1192 = vlaneseq
    %v1193 = vshrl.u32 %v1192, 7
    %v1194 = vsub.s32 %v1191, %v1193
    %v1195 = vrot.slane %v1181, %v1194
    %v1196 = vcombine.high %v1188, %v1188
    %v1197 = vcombine.high %v1195, %v1195
    %vm1214 = vcmask 254976
    %v1215 = vsel %vm1214, %v1137, -inf
    %v1216 = vrot.slane %v1215, 4
    %v1217 = vmax.f32 %v1215, %v1216
    %v1218 = vrot.slane %v1217, 2
    %v1219 = vmax.f32 %v1217, %v1218
    %v1220 = vrot.slane %v1219, 1
    %v1221 = vmax.f32 %v1219, %v1220
    %v1222 = vsel %vm1214, %v1145, -inf
    %v1223 = vrot.slane %v1222, 4
    %v1224 = vmax.f32 %v1222, %v1223
    %v1225 = vrot.slane %v1224, 2
    %v1226 = vmax.f32 %v1224, %v1225
    %v1227 = vrot.slane %v1226, 1
    %v1228 = vmax.f32 %v1226, %v1227
    %v1229 = vsel %vm1214, %v1144, -inf
    %v1230 = vrot.slane %v1229, 4
    %v1231 = vmax.f32 %v1229, %v1230
    %v1232 = vrot.slane %v1231, 2
    %v1233 = vmax.f32 %v1231, %v1232
    %v1234 = vrot.slane %v1233, 1
    %v1235 = vmax.f32 %v1233, %v1234
    %v1236 = vsel %vm1214, %v1146, -inf
    %v1237 = vrot.slane %v1236, 4
    %v1238 = vmax.f32 %v1236, %v1237
    %v1239 = vrot.slane %v1238, 2
    %v1240 = vmax.f32 %v1238, %v1239
    %v1241 = vrot.slane %v1240, 1
    %v1242 = vmax.f32 %v1240, %v1241
    %v1243 = vsel %vm1214, %v1154, -inf
    %v1244 = vrot.slane %v1243, 4
    %v1245 = vmax.f32 %v1243, %v1244
    %v1246 = vrot.slane %v1245, 2
    %v1247 = vmax.f32 %v1245, %v1246
    %v1248 = vrot.slane %v1247, 1
    %v1249 = vmax.f32 %v1247, %v1248
    %v1250 = vsel %vm1214, %v1162, -inf
    %v1251 = vrot.slane %v1250, 4
    %v1252 = vmax.f32 %v1250, %v1251
    %v1253 = vrot.slane %v1252, 2
    %v1254 = vmax.f32 %v1252, %v1253
    %v1255 = vrot.slane %v1254, 1
    %v1256 = vmax.f32 %v1254, %v1255
    %v1257 = vsel %vm1214, %v1161, -inf
    %v1258 = vrot.slane %v1257, 4
    %v1259 = vmax.f32 %v1257, %v1258
    %v1260 = vrot.slane %v1259, 2
    %v1261 = vmax.f32 %v1259, %v1260
    %v1262 = vrot.slane %v1261, 1
    %v1263 = vmax.f32 %v1261, %v1262
    %v1264 = vsel %vm1214, %v1163, -inf
    %v1265 = vrot.slane %v1264, 4
    %v1266 = vmax.f32 %v1264, %v1265
    %v1267 = vrot.slane %v1266, 2
    %v1268 = vmax.f32 %v1266, %v1267
    %v1269 = vrot.slane %v1268, 1
    %v1270 = vmax.f32 %v1268, %v1269
    %v1271 = vsel %vm1214, %v1171, -inf
    %v1272 = vrot.slane %v1271, 4
    %v1273 = vmax.f32 %v1271, %v1272
    %v1274 = vrot.slane %v1273, 2
    %v1275 = vmax.f32 %v1273, %v1274
    %v1276 = vrot.slane %v1275, 1
    %v1277 = vmax.f32 %v1275, %v1276
    %v1278 = vsel %vm1214, %v1179, -inf
    %v1279 = vrot.slane %v1278, 4
    %v1280 = vmax.f32 %v1278, %v1279
    %v1281 = vrot.slane %v1280, 2
    %v1282 = vmax.f32 %v1280, %v1281
    %v1283 = vrot.slane %v1282, 1
    %v1284 = vmax.f32 %v1282, %v1283
    %v1285 = vsel %vm1214, %v1178, -inf
    %v1286 = vrot.slane %v1285, 4
    %v1287 = vmax.f32 %v1285, %v1286
    %v1288 = vrot.slane %v1287, 2
    %v1289 = vmax.f32 %v1287, %v1288
    %v1290 = vrot.slane %v1289, 1
    %v1291 = vmax.f32 %v1289, %v1290
    %v1292 = vsel %vm1214, %v1180, -inf
    %v1293 = vrot.slane %v1292, 4
    %v1294 = vmax.f32 %v1292, %v1293
    %v1295 = vrot.slane %v1294, 2
    %v1296 = vmax.f32 %v1294, %v1295
    %v1297 = vrot.slane %v1296, 1
    %v1298 = vmax.f32 %v1296, %v1297
    %v1299 = vsel %vm1214, %v1188, -inf
    %v1300 = vrot.slane %v1299, 4
    %v1301 = vmax.f32 %v1299, %v1300
    %v1302 = vrot.slane %v1301, 2
    %v1303 = vmax.f32 %v1301, %v1302
    %v1304 = vrot.slane %v1303, 1
    %v1305 = vmax.f32 %v1303, %v1304
    %v1306 = vsel %vm1214, %v1196, -inf
    %v1307 = vrot.slane %v1306, 4
    %v1308 = vmax.f32 %v1306, %v1307
    %v1309 = vrot.slane %v1308, 2
    %v1310 = vmax.f32 %v1308, %v1309
    %v1311 = vrot.slane %v1310, 1
    %v1312 = vmax.f32 %v1310, %v1311
    %v1313 = vsel %vm1214, %v1195, -inf
    %v1314 = vrot.slane %v1313, 4
    %v1315 = vmax.f32 %v1313, %v1314
    %v1316 = vrot.slane %v1315, 2
    %v1317 = vmax.f32 %v1315, %v1316
    %v1318 = vrot.slane %v1317, 1
    %v1319 = vmax.f32 %v1317, %v1318
    %v1320 = vsel %vm1214, %v1197, -inf
    %v1321 = vrot.slane %v1320, 4
    %v1322 = vmax.f32 %v1320, %v1321
    %v1323 = vrot.slane %v1322, 2
    %v1324 = vmax.f32 %v1322, %v1323
    %v1325 = vrot.slane %v1324, 1
    %v1326 = vmax.f32 %v1324, %v1325
    %v1341 = vsel %vm710, %v1228, %v1221
    %v1342 = vsel %vm712, %v1235, %v1341
    %v1343 = vsel %vm714, %v1242, %v1342
    %v1344 = vsel %vm716, %v1249, %v1343
    %v1345 = vsel %vm718, %v1256, %v1344
    %v1346 = vsel %vm720, %v1263, %v1345
    %v1347 = vsel %vm710, %v1284, %v1277
    %v1348 = vsel %vm712, %v1291, %v1347
    %v1349 = vsel %vm714, %v1298, %v1348
    %v1350 = vsel %vm716, %v1305, %v1349
    %v1351 = vsel %vm718, %v1312, %v1350
    %v1352 = vsel %vm720, %v1319, %v1351
    %v1355 = vsel %vm49, 0.0, %v1346
    %v1356 = vsel %vm49, 0.0, %v1352
    %v1359 = vsel %vm722, %v1235, %v1228
    %v1360 = vsel %vm710, %v1242, %v1359
    %v1361 = vsel %vm712, %v1249, %v1360
    %v1362 = vsel %vm714, %v1256, %v1361
    %v1363 = vsel %vm716, %v1263, %v1362
    %v1364 = vsel %vm718, %v1270, %v1363
    %v1365 = vsel %vm722, %v1291, %v1284
    %v1366 = vsel %vm710, %v1298, %v1365
    %v1367 = vsel %vm712, %v1305, %v1366
    %v1368 = vsel %vm714, %v1312, %v1367
    %v1369 = vsel %vm716, %v1319, %v1368
    %v1370 = vsel %vm718, %v1326, %v1369
    %v1373 = vsel %vm68, %v1364, 0.0
    %v1374 = vsel %vm68, %v1370, 0.0
    %v1375 = vld [vmem:[%s5] sm:$0xff]
    %v1376 = vld [vmem:[%s5 + $0x8] sm:$0xff]
    %v1377 = vld [vmem:[%s5 + $0x10] sm:$0xff]
    %v1378 = vld [vmem:[%s5 + $0x18] sm:$0xff]
    %s1379 = scalar_lea.vmem %s5, 32
    %v1380 = vld [vmem:[%s1379] sm:$0xff]
    %v1381 = vld [vmem:[%s1379 + $0x8] sm:$0xff]
    %v1382 = vld [vmem:[%s1379 + $0x10] sm:$0xff]
    %v1383 = vld [vmem:[%s1379 + $0x18] sm:$0xff]
    %v1384 = vsel %vm722, %v1228, %v1221
    %v1385 = vsel %vm710, %v1235, %v1384
    %v1386 = vsel %vm712, %v1242, %v1385
    %v1387 = vsel %vm714, %v1249, %v1386
    %v1388 = vsel %vm716, %v1256, %v1387
    %v1389 = vsel %vm718, %v1263, %v1388
    %v1390 = vsel %vm720, %v1270, %v1389
    %v1391 = vsel %vm722, %v1284, %v1277
    %v1392 = vsel %vm710, %v1291, %v1391
    %v1393 = vsel %vm712, %v1298, %v1392
    %v1394 = vsel %vm714, %v1305, %v1393
    %v1395 = vsel %vm716, %v1312, %v1394
    %v1396 = vsel %vm718, %v1319, %v1395
    %v1397 = vsel %vm720, %v1326, %v1396
    %vm1398 = vcmask 261120
    %v1399 = vsel %vm1398, %v1390, 0
    %v1401 = vsel %vm1398, %v1397, 0
    %1403 = vmatprep.subr.mxu0 0.0
    %1404 = vmatpush1.msra.mxu0 %v1380
    %1405 = vmatprep.subr.mxu0 0.0
    %1406 = vmatpush1.msra.mxu0 %v1381
    %1407 = vmatprep.subr.mxu0 0.0
    %1408 = vmatpush1.msra.mxu0 %v1382
    %1409 = vmatprep.subr.mxu0 0.0
    %1410 = vmatpush1.msra.mxu0 %v1383
    %1411 = vmatprep.subr.mxu0 0.0
    %1412 = vmatpush1.msra.mxu0 0.0
    %1413 = vmatprep.subr.mxu0 0.0
    %1414 = vmatpush1.msra.mxu0 0.0
    %1415 = vmatprep.subr.mxu0 0.0
    %1416 = vmatpush1.msra.mxu0 0.0
    %1417 = vmatprep.subr.mxu0 0.0
    %1418 = vmatpush1.msra.mxu0 0.0
    %1419 = vmatprep.subr.mxu0 0.0
    %1420 = vmatpush1.msra.mxu0 0.0
    %1421 = vmatprep.subr.mxu0 0.0
    %1422 = vmatpush1.msra.mxu0 0.0
    %1423 = vmatprep.subr.mxu0 0.0
    %1424 = vmatpush1.msra.mxu0 0.0
    %1425 = vmatprep.subr.mxu0 0.0
    %1426 = vmatpush1.msra.mxu0 0.0
    %1427 = vmatprep.subr.mxu0 0.0
    %1428 = vmatpush1.msra.mxu0 0.0
    %1429 = vmatprep.subr.mxu0 0.0
    %1430 = vmatpush1.msra.mxu0 0.0
    %1431 = vmatprep.subr.mxu0 0.0
    %1432 = vmatpush1.msra.mxu0 0.0
    %1433 = vmatprep.subr.mxu0 0.0
    %1434 = vmatpush1.msra.mxu0 0.0
    %1435 = vmatprep.subr.mxu0 0.0
    %1436 = vmatpush1.msra.mxu0 0.0
    %1437 = vmatprep.subr.mxu0 0.0
    %1438 = vmatpush1.msra.mxu0 0.0
    %1439 = vmatprep.subr.mxu0 0.0
    %1440 = vmatpush1.msra.mxu0 0.0
    %1441 = vmatprep.subr.mxu0 0.0
    %1442 = vmatpush1.msra.mxu0 0.0
    %1443 = vmatprep.subr.mxu0 0.0
    %1444 = vmatpush1.msra.mxu0 0.0
    %1445 = vmatprep.subr.mxu0 0.0
    %1446 = vmatpush1.msra.mxu0 0.0
    %1447 = vmatprep.subr.mxu0 0.0
    %1448 = vmatpush1.msra.mxu0 0.0
    %1449 = vmatprep.subr.mxu0 0.0
    %1450 = vmatpush1.msra.mxu0 0.0
    %1451 = vmatprep.subr.mxu0 0.0
    %1452 = vmatpush1.msra.mxu0 0.0
    %1453 = vmatprep.subr.mxu0 0.0
    %1454 = vmatpush1.msra.mxu0 0.0
    %1455 = vmatprep.subr.mxu0 0.0
    %1456 = vmatpush1.msra.mxu0 0.0
    %1457 = vmatprep.subr.mxu0 0.0
    %1458 = vmatpush1.msra.mxu0 0.0
    %1459 = vmatprep.subr.mxu0 0.0
    %1460 = vmatpush1.msra.mxu0 0.0
    %1461 = vmatprep.subr.mxu0 0.0
    %1462 = vmatpush1.msra.mxu0 0.0
    %1463 = vmatprep.subr.mxu0 0.0
    %1464 = vmatpush1.msra.mxu0 0.0
    %1465 = vmatprep.subr.mxu0 0.0
    %1466 = vmatpush1.msra.mxu0 0.0
    %1467 = vmatprep.mubr.f32.mxu0 0.0
    %1468 = vmatmul.mubr.f32.gmra.mrb[0].mxu0 %v1399
    %v1469 = vpop.f32.mrb[0].mxu0
    %v1470 = vadd.f32 0.0, %v1469
    %v1471 = vpop.f32.mrb[0].mxu0
    %1472 = vmatprep.mubr.f32.mxu0 0.0
    %1473 = vmatmul.mubr.f32.gmra.mrb[0].mxu0 %v1401
    %v1474 = vpop.f32.mrb[0].mxu0
    %v1475 = vadd.f32 0.0, %v1474
    %v1476 = vpop.f32.mrb[0].mxu0
    %1477 = vdwg.mxu0
    %v1479 = vsel %vm1398, %v1355, 0
    %v1482 = vsel %vm1398, %v1356, 0
    %1484 = vmatprep.subr.mxu0 0.0
    %1485 = vmatpush1.msra.mxu0 %v1375
    %1486 = vmatprep.subr.mxu0 0.0
    %1487 = vmatpush1.msra.mxu0 %v1376
    %1488 = vmatprep.subr.mxu0 0.0
    %1489 = vmatpush1.msra.mxu0 %v1377
    %1490 = vmatprep.subr.mxu0 0.0
    %1491 = vmatpush1.msra.mxu0 %v1378
    %1492 = vmatprep.subr.mxu0 0.0
    %1493 = vmatpush1.msra.mxu0 0.0
    %1494 = vmatprep.subr.mxu0 0.0
    %1495 = vmatpush1.msra.mxu0 0.0
    %1496 = vmatprep.subr.mxu0 0.0
    %1497 = vmatpush1.msra.mxu0 0.0
    %1498 = vmatprep.subr.mxu0 0.0
    %1499 = vmatpush1.msra.mxu0 0.0
    %1500 = vmatprep.subr.mxu0 0.0
    %1501 = vmatpush1.msra.mxu0 0.0
    %1502 = vmatprep.subr.mxu0 0.0
    %1503 = vmatpush1.msra.mxu0 0.0
    %1504 = vmatprep.subr.mxu0 0.0
    %1505 = vmatpush1.msra.mxu0 0.0
    %1506 = vmatprep.subr.mxu0 0.0
    %1507 = vmatpush1.msra.mxu0 0.0
    %1508 = vmatprep.subr.mxu0 0.0
    %1509 = vmatpush1.msra.mxu0 0.0
    %1510 = vmatprep.subr.mxu0 0.0
    %1511 = vmatpush1.msra.mxu0 0.0
    %1512 = vmatprep.subr.mxu0 0.0
    %1513 = vmatpush1.msra.mxu0 0.0
    %1514 = vmatprep.subr.mxu0 0.0
    %1515 = vmatpush1.msra.mxu0 0.0
    %1516 = vmatprep.subr.mxu0 0.0
    %1517 = vmatpush1.msra.mxu0 0.0
    %1518 = vmatprep.subr.mxu0 0.0
    %1519 = vmatpush1.msra.mxu0 0.0
    %1520 = vmatprep.subr.mxu0 0.0
    %1521 = vmatpush1.msra.mxu0 0.0
    %1522 = vmatprep.subr.mxu0 0.0
    %1523 = vmatpush1.msra.mxu0 0.0
    %1524 = vmatprep.subr.mxu0 0.0
    %1525 = vmatpush1.msra.mxu0 0.0
    %1526 = vmatprep.subr.mxu0 0.0
    %1527 = vmatpush1.msra.mxu0 0.0
    %1528 = vmatprep.subr.mxu0 0.0
    %1529 = vmatpush1.msra.mxu0 0.0
    %1530 = vmatprep.subr.mxu0 0.0
    %1531 = vmatpush1.msra.mxu0 0.0
    %1532 = vmatprep.subr.mxu0 0.0
    %1533 = vmatpush1.msra.mxu0 0.0
    %1534 = vmatprep.subr.mxu0 0.0
    %1535 = vmatpush1.msra.mxu0 0.0
    %1536 = vmatprep.subr.mxu0 0.0
    %1537 = vmatpush1.msra.mxu0 0.0
    %1538 = vmatprep.subr.mxu0 0.0
    %1539 = vmatpush1.msra.mxu0 0.0
    %1540 = vmatprep.subr.mxu0 0.0
    %1541 = vmatpush1.msra.mxu0 0.0
    %1542 = vmatprep.subr.mxu0 0.0
    %1543 = vmatpush1.msra.mxu0 0.0
    %1544 = vmatprep.subr.mxu0 0.0
    %1545 = vmatpush1.msra.mxu0 0.0
    %1546 = vmatprep.subr.mxu0 0.0
    %1547 = vmatpush1.msra.mxu0 0.0
    %1548 = vmatprep.mubr.f32.mxu0 0.0
    %1549 = vmatmul.mubr.f32.gmra.mrb[0].mxu0 %v1479
    %v1550 = vpop.f32.mrb[0].mxu0
    %v1551 = vadd.f32 %v1470, %v1550
    %v1552 = vpop.f32.mrb[0].mxu0
    %1553 = vmatprep.mubr.f32.mxu0 0.0
    %1554 = vmatmul.mubr.f32.gmra.mrb[0].mxu0 %v1482
    %v1555 = vpop.f32.mrb[0].mxu0
    %v1556 = vadd.f32 %v1475, %v1555
    %v1557 = vpop.f32.mrb[0].mxu0
    %1558 = vdwg.mxu0
    %s1559 = scalar_lea.vmem %s5, 64
    %v1560 = vld [vmem:[%s1559] sm:$0xff]
    %v1561 = vld [vmem:[%s1559 + $0x8] sm:$0xff]
    %v1562 = vld [vmem:[%s1559 + $0x10] sm:$0xff]
    %v1563 = vld [vmem:[%s1559 + $0x18] sm:$0xff]
    %v1565 = vsel %vm1398, %v1373, 0
    %v1568 = vsel %vm1398, %v1374, 0
    %1570 = vmatprep.subr.mxu0 0.0
    %1571 = vmatpush1.msra.mxu0 %v1560
    %1572 = vmatprep.subr.mxu0 0.0
    %1573 = vmatpush1.msra.mxu0 %v1561
    %1574 = vmatprep.subr.mxu0 0.0
    %1575 = vmatpush1.msra.mxu0 %v1562
    %1576 = vmatprep.subr.mxu0 0.0
    %1577 = vmatpush1.msra.mxu0 %v1563
    %1578 = vmatprep.subr.mxu0 0.0
    %1579 = vmatpush1.msra.mxu0 0.0
    %1580 = vmatprep.subr.mxu0 0.0
    %1581 = vmatpush1.msra.mxu0 0.0
    %1582 = vmatprep.subr.mxu0 0.0
    %1583 = vmatpush1.msra.mxu0 0.0
    %1584 = vmatprep.subr.mxu0 0.0
    %1585 = vmatpush1.msra.mxu0 0.0
    %1586 = vmatprep.subr.mxu0 0.0
    %1587 = vmatpush1.msra.mxu0 0.0
    %1588 = vmatprep.subr.mxu0 0.0
    %1589 = vmatpush1.msra.mxu0 0.0
    %1590 = vmatprep.subr.mxu0 0.0
    %1591 = vmatpush1.msra.mxu0 0.0
    %1592 = vmatprep.subr.mxu0 0.0
    %1593 = vmatpush1.msra.mxu0 0.0
    %1594 = vmatprep.subr.mxu0 0.0
    %1595 = vmatpush1.msra.mxu0 0.0
    %1596 = vmatprep.subr.mxu0 0.0
    %1597 = vmatpush1.msra.mxu0 0.0
    %1598 = vmatprep.subr.mxu0 0.0
    %1599 = vmatpush1.msra.mxu0 0.0
    %1600 = vmatprep.subr.mxu0 0.0
    %1601 = vmatpush1.msra.mxu0 0.0
    %1602 = vmatprep.subr.mxu0 0.0
    %1603 = vmatpush1.msra.mxu0 0.0
    %1604 = vmatprep.subr.mxu0 0.0
    %1605 = vmatpush1.msra.mxu0 0.0
    %1606 = vmatprep.subr.mxu0 0.0
    %1607 = vmatpush1.msra.mxu0 0.0
    %1608 = vmatprep.subr.mxu0 0.0
    %1609 = vmatpush1.msra.mxu0 0.0
    %1610 = vmatprep.subr.mxu0 0.0
    %1611 = vmatpush1.msra.mxu0 0.0
    %1612 = vmatprep.subr.mxu0 0.0
    %1613 = vmatpush1.msra.mxu0 0.0
    %1614 = vmatprep.subr.mxu0 0.0
    %1615 = vmatpush1.msra.mxu0 0.0
    %1616 = vmatprep.subr.mxu0 0.0
    %1617 = vmatpush1.msra.mxu0 0.0
    %1618 = vmatprep.subr.mxu0 0.0
    %1619 = vmatpush1.msra.mxu0 0.0
    %1620 = vmatprep.subr.mxu0 0.0
    %1621 = vmatpush1.msra.mxu0 0.0
    %1622 = vmatprep.subr.mxu0 0.0
    %1623 = vmatpush1.msra.mxu0 0.0
    %1624 = vmatprep.subr.mxu0 0.0
    %1625 = vmatpush1.msra.mxu0 0.0
    %1626 = vmatprep.subr.mxu0 0.0
    %1627 = vmatpush1.msra.mxu0 0.0
    %1628 = vmatprep.subr.mxu0 0.0
    %1629 = vmatpush1.msra.mxu0 0.0
    %1630 = vmatprep.subr.mxu0 0.0
    %1631 = vmatpush1.msra.mxu0 0.0
    %1632 = vmatprep.subr.mxu0 0.0
    %1633 = vmatpush1.msra.mxu0 0.0
    %1634 = vmatprep.mubr.f32.mxu0 0.0
    %1635 = vmatmul.mubr.f32.gmra.mrb[0].mxu0 %v1565
    %v1636 = vpop.f32.mrb[0].mxu0
    %v1637 = vadd.f32 0.0, %v1636
    %v1638 = vpop.f32.mrb[0].mxu0
    %1639 = vmatprep.mubr.f32.mxu0 0.0
    %1640 = vmatmul.mubr.f32.gmra.mrb[0].mxu0 %v1568
    %v1641 = vpop.f32.mrb[0].mxu0
    %v1642 = vadd.f32 0.0, %v1641
    %v1643 = vpop.f32.mrb[0].mxu0
    %1644 = vdwg.mxu0
    %v1645 = vadd.f32 %v1551, %v1637
    %v1646 = vadd.f32 %v1556, %v1642
    %v1647 = vld [vmem:[%s6] sm:$0x1]
    %v1649 = vlaneseq
    %v1650 = vshrl.u32 %v1649, 7
    %v1651 = vsub.s32 0, %v1650
    %v1652 = vrot.slane %v1647, %v1651
    %v1654 = vadd.f32 %v1645, %v1652
    %v1655 = vadd.f32 %v1646, %v1652
    %vm1656 = vcmp.ge.f32.partialorder %v1654, 0.0
    %vm1657 = vcmp.ge.f32.partialorder %v1655, 0.0
    %v1658 = vmul.f32 %v1654, 0.2
    %v1659 = vmul.f32 %v1655, 0.2
    %v1660 = vsel %vm1656, %v1654, %v1658
    %v1661 = vsel %vm1657, %v1655, %v1659
    %v1664 = vcombine.high %v1660, %v1660
    %v1666 = vunpack.c.l.s4 1983009808
    %v1667 = vunpack.c.0.s8 %v1666
    %v1668 = vlaneseq
    %v1669 = vshrl.u32 %v1668, 7
    %v1670 = vsub.s32 %v1667, %v1669
    %v1671 = vrot.slane %v1660, %v1670
    %v1673 = vunpack.c.l.s4 1983009808
    %v1674 = vunpack.c.0.s8 %v1673
    %v1675 = vlaneseq
    %v1676 = vshrl.u32 %v1675, 7
    %v1677 = vsub.s32 %v1674, %v1676
    %v1678 = vrot.slane %v1664, %v1677
    %v1679 = vcombine.high %v1671, %v1671
    %v1680 = vcombine.high %v1678, %v1678
    %v1681 = vcombine.high %v1661, %v1661
    %v1683 = vunpack.c.l.s4 1983009808
    %v1684 = vunpack.c.0.s8 %v1683
    %v1685 = vlaneseq
    %v1686 = vshrl.u32 %v1685, 7
    %v1687 = vsub.s32 %v1684, %v1686
    %v1688 = vrot.slane %v1661, %v1687
    %v1690 = vunpack.c.l.s4 1983009808
    %v1691 = vunpack.c.0.s8 %v1690
    %v1692 = vlaneseq
    %v1693 = vshrl.u32 %v1692, 7
    %v1694 = vsub.s32 %v1691, %v1693
    %v1695 = vrot.slane %v1681, %v1694
    %v1696 = vcombine.high %v1688, %v1688
    %v1697 = vcombine.high %v1695, %v1695
    %vm1706 = vcmask 517120
    %v1707 = vsel %vm1706, %v1671, -inf
    %v1708 = vrot.slane %v1707, 4
    %v1709 = vmax.f32 %v1707, %v1708
    %v1710 = vrot.slane %v1709, 2
    %v1711 = vmax.f32 %v1709, %v1710
    %v1712 = vrot.slane %v1711, 1
    %v1713 = vmax.f32 %v1711, %v1712
    %v1714 = vsel %vm1706, %v1679, -inf
    %v1715 = vrot.slane %v1714, 4
    %v1716 = vmax.f32 %v1714, %v1715
    %v1717 = vrot.slane %v1716, 2
    %v1718 = vmax.f32 %v1716, %v1717
    %v1719 = vrot.slane %v1718, 1
    %v1720 = vmax.f32 %v1718, %v1719
    %v1721 = vsel %vm1706, %v1678, -inf
    %v1722 = vrot.slane %v1721, 4
    %v1723 = vmax.f32 %v1721, %v1722
    %v1724 = vrot.slane %v1723, 2
    %v1725 = vmax.f32 %v1723, %v1724
    %v1726 = vrot.slane %v1725, 1
    %v1727 = vmax.f32 %v1725, %v1726
    %v1728 = vsel %vm1706, %v1680, -inf
    %v1729 = vrot.slane %v1728, 4
    %v1730 = vmax.f32 %v1728, %v1729
    %v1731 = vrot.slane %v1730, 2
    %v1732 = vmax.f32 %v1730, %v1731
    %v1733 = vrot.slane %v1732, 1
    %v1734 = vmax.f32 %v1732, %v1733
    %v1735 = vsel %vm1706, %v1688, -inf
    %v1736 = vrot.slane %v1735, 4
    %v1737 = vmax.f32 %v1735, %v1736
    %v1738 = vrot.slane %v1737, 2
    %v1739 = vmax.f32 %v1737, %v1738
    %v1740 = vrot.slane %v1739, 1
    %v1741 = vmax.f32 %v1739, %v1740
    %v1742 = vsel %vm1706, %v1696, -inf
    %v1743 = vrot.slane %v1742, 4
    %v1744 = vmax.f32 %v1742, %v1743
    %v1745 = vrot.slane %v1744, 2
    %v1746 = vmax.f32 %v1744, %v1745
    %v1747 = vrot.slane %v1746, 1
    %v1748 = vmax.f32 %v1746, %v1747
    %v1749 = vsel %vm1706, %v1695, -inf
    %v1750 = vrot.slane %v1749, 4
    %v1751 = vmax.f32 %v1749, %v1750
    %v1752 = vrot.slane %v1751, 2
    %v1753 = vmax.f32 %v1751, %v1752
    %v1754 = vrot.slane %v1753, 1
    %v1755 = vmax.f32 %v1753, %v1754
    %v1756 = vsel %vm1706, %v1697, -inf
    %v1757 = vrot.slane %v1756, 4
    %v1758 = vmax.f32 %v1756, %v1757
    %v1759 = vrot.slane %v1758, 2
    %v1760 = vmax.f32 %v1758, %v1759
    %v1761 = vrot.slane %v1760, 1
    %v1762 = vmax.f32 %v1760, %v1761
    %v1763 = vld [vmem:[%s7] sm:$0xff]
    %v1764 = vld [vmem:[%s7 + $0x8] sm:$0xff]
    %v1765 = vld [vmem:[%s7 + $0x10] sm:$0xff]
    %v1766 = vld [vmem:[%s7 + $0x18] sm:$0xff]
    %v1767 = vld [vmem:[%s7 + $0x20] sm:$0xff]
    %v1768 = vld [vmem:[%s7 + $0x28] sm:$0xff]
    %v1769 = vld [vmem:[%s7 + $0x30] sm:$0xff]
    %v1770 = vld [vmem:[%s7 + $0x38] sm:$0xff]
    %s1771 = scalar_lea.vmem %s7, 64
    %v1772 = vld [vmem:[%s1771] sm:$0xff]
    %v1773 = vld [vmem:[%s1771 + $0x8] sm:$0xff]
    %v1774 = vld [vmem:[%s1771 + $0x10] sm:$0xff]
    %v1775 = vld [vmem:[%s1771 + $0x18] sm:$0xff]
    %v1776 = vld [vmem:[%s1771 + $0x20] sm:$0xff]
    %v1777 = vld [vmem:[%s1771 + $0x28] sm:$0xff]
    %v1778 = vld [vmem:[%s1771 + $0x30] sm:$0xff]
    %v1779 = vld [vmem:[%s1771 + $0x38] sm:$0xff]
    %v1782 = vsel %vm722, %v1748, %v1720
    %vm1783 = vcmask 523264
    %v1784 = vsel %vm1783, %v1782, 0
    %1786 = vmatprep.subr.mxu0 0.0
    %1787 = vmatpush1.msra.mxu0 %v1772
    %1788 = vmatprep.subr.mxu0 0.0
    %1789 = vmatpush1.msra.mxu0 %v1773
    %1790 = vmatprep.subr.mxu0 0.0
    %1791 = vmatpush1.msra.mxu0 %v1774
    %1792 = vmatprep.subr.mxu0 0.0
    %1793 = vmatpush1.msra.mxu0 %v1775
    %1794 = vmatprep.subr.mxu0 0.0
    %1795 = vmatpush1.msra.mxu0 %v1776
    %1796 = vmatprep.subr.mxu0 0.0
    %1797 = vmatpush1.msra.mxu0 %v1777
    %1798 = vmatprep.subr.mxu0 0.0
    %1799 = vmatpush1.msra.mxu0 %v1778
    %1800 = vmatprep.subr.mxu0 0.0
    %1801 = vmatpush1.msra.mxu0 %v1779
    %1802 = vmatprep.subr.mxu0 0.0
    %1803 = vmatpush1.msra.mxu0 0.0
    %1804 = vmatprep.subr.mxu0 0.0
    %1805 = vmatpush1.msra.mxu0 0.0
    %1806 = vmatprep.subr.mxu0 0.0
    %1807 = vmatpush1.msra.mxu0 0.0
    %1808 = vmatprep.subr.mxu0 0.0
    %1809 = vmatpush1.msra.mxu0 0.0
    %1810 = vmatprep.subr.mxu0 0.0
    %1811 = vmatpush1.msra.mxu0 0.0
    %1812 = vmatprep.subr.mxu0 0.0
    %1813 = vmatpush1.msra.mxu0 0.0
    %1814 = vmatprep.subr.mxu0 0.0
    %1815 = vmatpush1.msra.mxu0 0.0
    %1816 = vmatprep.subr.mxu0 0.0
    %1817 = vmatpush1.msra.mxu0 0.0
    %1818 = vmatprep.subr.mxu0 0.0
    %1819 = vmatpush1.msra.mxu0 0.0
    %1820 = vmatprep.subr.mxu0 0.0
    %1821 = vmatpush1.msra.mxu0 0.0
    %1822 = vmatprep.subr.mxu0 0.0
    %1823 = vmatpush1.msra.mxu0 0.0
    %1824 = vmatprep.subr.mxu0 0.0
    %1825 = vmatpush1.msra.mxu0 0.0
    %1826 = vmatprep.subr.mxu0 0.0
    %1827 = vmatpush1.msra.mxu0 0.0
    %1828 = vmatprep.subr.mxu0 0.0
    %1829 = vmatpush1.msra.mxu0 0.0
    %1830 = vmatprep.subr.mxu0 0.0
    %1831 = vmatpush1.msra.mxu0 0.0
    %1832 = vmatprep.subr.mxu0 0.0
    %1833 = vmatpush1.msra.mxu0 0.0
    %1834 = vmatprep.subr.mxu0 0.0
    %1835 = vmatpush1.msra.mxu0 0.0
    %1836 = vmatprep.subr.mxu0 0.0
    %1837 = vmatpush1.msra.mxu0 0.0
    %1838 = vmatprep.subr.mxu0 0.0
    %1839 = vmatpush1.msra.mxu0 0.0
    %1840 = vmatprep.subr.mxu0 0.0
    %1841 = vmatpush1.msra.mxu0 0.0
    %1842 = vmatprep.subr.mxu0 0.0
    %1843 = vmatpush1.msra.mxu0 0.0
    %1844 = vmatprep.subr.mxu0 0.0
    %1845 = vmatpush1.msra.mxu0 0.0
    %1846 = vmatprep.subr.mxu0 0.0
    %1847 = vmatpush1.msra.mxu0 0.0
    %1848 = vmatprep.subr.mxu0 0.0
    %1849 = vmatpush1.msra.mxu0 0.0
    %1850 = vmatprep.mubr.f32.mxu0 0.0
    %1851 = vmatmul.mubr.f32.gmra.mrb[0].mxu0 %v1784
    %v1852 = vpop.f32.mrb[0].mxu0
    %v1853 = vadd.f32 0.0, %v1852
    %v1854 = vpop.f32.mrb[0].mxu0
    %1855 = vdwg.mxu0
    %v1858 = vsel %vm722, %v1741, %v1713
    %v1859 = vsel %vm1783, %v1858, 0
    %1861 = vmatprep.subr.mxu0 0.0
    %1862 = vmatpush1.msra.mxu0 %v1763
    %1863 = vmatprep.subr.mxu0 0.0
    %1864 = vmatpush1.msra.mxu0 %v1764
    %1865 = vmatprep.subr.mxu0 0.0
    %1866 = vmatpush1.msra.mxu0 %v1765
    %1867 = vmatprep.subr.mxu0 0.0
    %1868 = vmatpush1.msra.mxu0 %v1766
    %1869 = vmatprep.subr.mxu0 0.0
    %1870 = vmatpush1.msra.mxu0 %v1767
    %1871 = vmatprep.subr.mxu0 0.0
    %1872 = vmatpush1.msra.mxu0 %v1768
    %1873 = vmatprep.subr.mxu0 0.0
    %1874 = vmatpush1.msra.mxu0 %v1769
    %1875 = vmatprep.subr.mxu0 0.0
    %1876 = vmatpush1.msra.mxu0 %v1770
    %1877 = vmatprep.subr.mxu0 0.0
    %1878 = vmatpush1.msra.mxu0 0.0
    %1879 = vmatprep.subr.mxu0 0.0
    %1880 = vmatpush1.msra.mxu0 0.0
    %1881 = vmatprep.subr.mxu0 0.0
    %1882 = vmatpush1.msra.mxu0 0.0
    %1883 = vmatprep.subr.mxu0 0.0
    %1884 = vmatpush1.msra.mxu0 0.0
    %1885 = vmatprep.subr.mxu0 0.0
    %1886 = vmatpush1.msra.mxu0 0.0
    %1887 = vmatprep.subr.mxu0 0.0
    %1888 = vmatpush1.msra.mxu0 0.0
    %1889 = vmatprep.subr.mxu0 0.0
    %1890 = vmatpush1.msra.mxu0 0.0
    %1891 = vmatprep.subr.mxu0 0.0
    %1892 = vmatpush1.msra.mxu0 0.0
    %1893 = vmatprep.subr.mxu0 0.0
    %1894 = vmatpush1.msra.mxu0 0.0
    %1895 = vmatprep.subr.mxu0 0.0
    %1896 = vmatpush1.msra.mxu0 0.0
    %1897 = vmatprep.subr.mxu0 0.0
    %1898 = vmatpush1.msra.mxu0 0.0
    %1899 = vmatprep.subr.mxu0 0.0
    %1900 = vmatpush1.msra.mxu0 0.0
    %1901 = vmatprep.subr.mxu0 0.0
    %1902 = vmatpush1.msra.mxu0 0.0
    %1903 = vmatprep.subr.mxu0 0.0
    %1904 = vmatpush1.msra.mxu0 0.0
    %1905 = vmatprep.subr.mxu0 0.0
    %1906 = vmatpush1.msra.mxu0 0.0
    %1907 = vmatprep.subr.mxu0 0.0
    %1908 = vmatpush1.msra.mxu0 0.0
    %1909 = vmatprep.subr.mxu0 0.0
    %1910 = vmatpush1.msra.mxu0 0.0
    %1911 = vmatprep.subr.mxu0 0.0
    %1912 = vmatpush1.msra.mxu0 0.0
    %1913 = vmatprep.subr.mxu0 0.0
    %1914 = vmatpush1.msra.mxu0 0.0
    %1915 = vmatprep.subr.mxu0 0.0
    %1916 = vmatpush1.msra.mxu0 0.0
    %1917 = vmatprep.subr.mxu0 0.0
    %1918 = vmatpush1.msra.mxu0 0.0
    %1919 = vmatprep.subr.mxu0 0.0
    %1920 = vmatpush1.msra.mxu0 0.0
    %1921 = vmatprep.subr.mxu0 0.0
    %1922 = vmatpush1.msra.mxu0 0.0
    %1923 = vmatprep.subr.mxu0 0.0
    %1924 = vmatpush1.msra.mxu0 0.0
    %1925 = vmatprep.mubr.f32.mxu0 0.0
    %1926 = vmatmul.mubr.f32.gmra.mrb[0].mxu0 %v1859
    %v1927 = vpop.f32.mrb[0].mxu0
    %v1928 = vadd.f32 %v1853, %v1927
    %v1929 = vpop.f32.mrb[0].mxu0
    %1930 = vdwg.mxu0
    %s1931 = scalar_lea.vmem %s7, 128
    %v1932 = vld [vmem:[%s1931] sm:$0xff]
    %v1933 = vld [vmem:[%s1931 + $0x8] sm:$0xff]
    %v1934 = vld [vmem:[%s1931 + $0x10] sm:$0xff]
    %v1935 = vld [vmem:[%s1931 + $0x18] sm:$0xff]
    %v1936 = vld [vmem:[%s1931 + $0x20] sm:$0xff]
    %v1937 = vld [vmem:[%s1931 + $0x28] sm:$0xff]
    %v1938 = vld [vmem:[%s1931 + $0x30] sm:$0xff]
    %v1939 = vld [vmem:[%s1931 + $0x38] sm:$0xff]
    %v1942 = vsel %vm722, %v1755, %v1727
    %v1943 = vsel %vm1783, %v1942, 0
    %1945 = vmatprep.subr.mxu0 0.0
    %1946 = vmatpush1.msra.mxu0 %v1932
    %1947 = vmatprep.subr.mxu0 0.0
    %1948 = vmatpush1.msra.mxu0 %v1933
    %1949 = vmatprep.subr.mxu0 0.0
    %1950 = vmatpush1.msra.mxu0 %v1934
    %1951 = vmatprep.subr.mxu0 0.0
    %1952 = vmatpush1.msra.mxu0 %v1935
    %1953 = vmatprep.subr.mxu0 0.0
    %1954 = vmatpush1.msra.mxu0 %v1936
    %1955 = vmatprep.subr.mxu0 0.0
    %1956 = vmatpush1.msra.mxu0 %v1937
    %1957 = vmatprep.subr.mxu0 0.0
    %1958 = vmatpush1.msra.mxu0 %v1938
    %1959 = vmatprep.subr.mxu0 0.0
    %1960 = vmatpush1.msra.mxu0 %v1939
    %1961 = vmatprep.subr.mxu0 0.0
    %1962 = vmatpush1.msra.mxu0 0.0
    %1963 = vmatprep.subr.mxu0 0.0
    %1964 = vmatpush1.msra.mxu0 0.0
    %1965 = vmatprep.subr.mxu0 0.0
    %1966 = vmatpush1.msra.mxu0 0.0
    %1967 = vmatprep.subr.mxu0 0.0
    %1968 = vmatpush1.msra.mxu0 0.0
    %1969 = vmatprep.subr.mxu0 0.0
    %1970 = vmatpush1.msra.mxu0 0.0
    %1971 = vmatprep.subr.mxu0 0.0
    %1972 = vmatpush1.msra.mxu0 0.0
    %1973 = vmatprep.subr.mxu0 0.0
    %1974 = vmatpush1.msra.mxu0 0.0
    %1975 = vmatprep.subr.mxu0 0.0
    %1976 = vmatpush1.msra.mxu0 0.0
    %1977 = vmatprep.subr.mxu0 0.0
    %1978 = vmatpush1.msra.mxu0 0.0
    %1979 = vmatprep.subr.mxu0 0.0
    %1980 = vmatpush1.msra.mxu0 0.0
    %1981 = vmatprep.subr.mxu0 0.0
    %1982 = vmatpush1.msra.mxu0 0.0
    %1983 = vmatprep.subr.mxu0 0.0
    %1984 = vmatpush1.msra.mxu0 0.0
    %1985 = vmatprep.subr.mxu0 0.0
    %1986 = vmatpush1.msra.mxu0 0.0
    %1987 = vmatprep.subr.mxu0 0.0
    %1988 = vmatpush1.msra.mxu0 0.0
    %1989 = vmatprep.subr.mxu0 0.0
    %1990 = vmatpush1.msra.mxu0 0.0
    %1991 = vmatprep.subr.mxu0 0.0
    %1992 = vmatpush1.msra.mxu0 0.0
    %1993 = vmatprep.subr.mxu0 0.0
    %1994 = vmatpush1.msra.mxu0 0.0
    %1995 = vmatprep.subr.mxu0 0.0
    %1996 = vmatpush1.msra.mxu0 0.0
    %1997 = vmatprep.subr.mxu0 0.0
    %1998 = vmatpush1.msra.mxu0 0.0
    %1999 = vmatprep.subr.mxu0 0.0
    %2000 = vmatpush1.msra.mxu0 0.0
    %2001 = vmatprep.subr.mxu0 0.0
    %2002 = vmatpush1.msra.mxu0 0.0
    %2003 = vmatprep.subr.mxu0 0.0
    %2004 = vmatpush1.msra.mxu0 0.0
    %2005 = vmatprep.subr.mxu0 0.0
    %2006 = vmatpush1.msra.mxu0 0.0
    %2007 = vmatprep.subr.mxu0 0.0
    %2008 = vmatpush1.msra.mxu0 0.0
    %2009 = vmatprep.mubr.f32.mxu0 0.0
    %2010 = vmatmul.mubr.f32.gmra.mrb[0].mxu0 %v1943
    %v2011 = vpop.f32.mrb[0].mxu0
    %v2012 = vadd.f32 0.0, %v2011
    %v2013 = vpop.f32.mrb[0].mxu0
    %2014 = vdwg.mxu0
    %v2015 = vadd.f32 %v1928, %v2012
    %s2016 = scalar_lea.vmem %s7, 192
    %v2017 = vld [vmem:[%s2016] sm:$0xff]
    %v2018 = vld [vmem:[%s2016 + $0x8] sm:$0xff]
    %v2019 = vld [vmem:[%s2016 + $0x10] sm:$0xff]
    %v2020 = vld [vmem:[%s2016 + $0x18] sm:$0xff]
    %v2021 = vld [vmem:[%s2016 + $0x20] sm:$0xff]
    %v2022 = vld [vmem:[%s2016 + $0x28] sm:$0xff]
    %v2023 = vld [vmem:[%s2016 + $0x30] sm:$0xff]
    %v2024 = vld [vmem:[%s2016 + $0x38] sm:$0xff]
    %v2027 = vsel %vm722, %v1762, %v1734
    %v2028 = vsel %vm1783, %v2027, 0
    %2030 = vmatprep.subr.mxu0 0.0
    %2031 = vmatpush1.msra.mxu0 %v2017
    %2032 = vmatprep.subr.mxu0 0.0
    %2033 = vmatpush1.msra.mxu0 %v2018
    %2034 = vmatprep.subr.mxu0 0.0
    %2035 = vmatpush1.msra.mxu0 %v2019
    %2036 = vmatprep.subr.mxu0 0.0
    %2037 = vmatpush1.msra.mxu0 %v2020
    %2038 = vmatprep.subr.mxu0 0.0
    %2039 = vmatpush1.msra.mxu0 %v2021
    %2040 = vmatprep.subr.mxu0 0.0
    %2041 = vmatpush1.msra.mxu0 %v2022
    %2042 = vmatprep.subr.mxu0 0.0
    %2043 = vmatpush1.msra.mxu0 %v2023
    %2044 = vmatprep.subr.mxu0 0.0
    %2045 = vmatpush1.msra.mxu0 %v2024
    %2046 = vmatprep.subr.mxu0 0.0
    %2047 = vmatpush1.msra.mxu0 0.0
    %2048 = vmatprep.subr.mxu0 0.0
    %2049 = vmatpush1.msra.mxu0 0.0
    %2050 = vmatprep.subr.mxu0 0.0
    %2051 = vmatpush1.msra.mxu0 0.0
    %2052 = vmatprep.subr.mxu0 0.0
    %2053 = vmatpush1.msra.mxu0 0.0
    %2054 = vmatprep.subr.mxu0 0.0
    %2055 = vmatpush1.msra.mxu0 0.0
    %2056 = vmatprep.subr.mxu0 0.0
    %2057 = vmatpush1.msra.mxu0 0.0
    %2058 = vmatprep.subr.mxu0 0.0
    %2059 = vmatpush1.msra.mxu0 0.0
    %2060 = vmatprep.subr.mxu0 0.0
    %2061 = vmatpush1.msra.mxu0 0.0
    %2062 = vmatprep.subr.mxu0 0.0
    %2063 = vmatpush1.msra.mxu0 0.0
    %2064 = vmatprep.subr.mxu0 0.0
    %2065 = vmatpush1.msra.mxu0 0.0
    %2066 = vmatprep.subr.mxu0 0.0
    %2067 = vmatpush1.msra.mxu0 0.0
    %2068 = vmatprep.subr.mxu0 0.0
    %2069 = vmatpush1.msra.mxu0 0.0
    %2070 = vmatprep.subr.mxu0 0.0
    %2071 = vmatpush1.msra.mxu0 0.0
    %2072 = vmatprep.subr.mxu0 0.0
    %2073 = vmatpush1.msra.mxu0 0.0
    %2074 = vmatprep.subr.mxu0 0.0
    %2075 = vmatpush1.msra.mxu0 0.0
    %2076 = vmatprep.subr.mxu0 0.0
    %2077 = vmatpush1.msra.mxu0 0.0
    %2078 = vmatprep.subr.mxu0 0.0
    %2079 = vmatpush1.msra.mxu0 0.0
    %2080 = vmatprep.subr.mxu0 0.0
    %2081 = vmatpush1.msra.mxu0 0.0
    %2082 = vmatprep.subr.mxu0 0.0
    %2083 = vmatpush1.msra.mxu0 0.0
    %2084 = vmatprep.subr.mxu0 0.0
    %2085 = vmatpush1.msra.mxu0 0.0
    %2086 = vmatprep.subr.mxu0 0.0
    %2087 = vmatpush1.msra.mxu0 0.0
    %2088 = vmatprep.subr.mxu0 0.0
    %2089 = vmatpush1.msra.mxu0 0.0
    %2090 = vmatprep.subr.mxu0 0.0
    %2091 = vmatpush1.msra.mxu0 0.0
    %2092 = vmatprep.subr.mxu0 0.0
    %2093 = vmatpush1.msra.mxu0 0.0
    %2094 = vmatprep.mubr.f32.mxu0 0.0
    %2095 = vmatmul.mubr.f32.gmra.mrb[0].mxu0 %v2028
    %v2096 = vpop.f32.mrb[0].mxu0
    %v2097 = vadd.f32 0.0, %v2096
    %v2098 = vpop.f32.mrb[0].mxu0
    %2099 = vdwg.mxu0
    %v2100 = vadd.f32 %v2015, %v2097
    %v2101 = vld [vmem:[%s8] sm:$0x1]
    %v2103 = vlaneseq
    %v2104 = vshrl.u32 %v2103, 7
    %v2105 = vsub.s32 0, %v2104
    %v2106 = vrot.slane %v2101, %v2105
    %v2108 = vadd.f32 %v2100, %v2106
    %vm2109 = vcmask 58368
    %2110 = vst.msk [vmem:[#allocation2] sm:$0x3] %vm2109, %v2108
    // Predicated region
    $region38: #{classifier_forward.1} parent=1 // pred_check
      _
    $region39: #{classifier_forward.1} parent=1 // pred_check_branch
      %2112 = sbr.rel (0) target = $region41
    $region40: #{classifier_forward.1} parent=1 // pred_region
      %s2114 = ssub.s32 32, 32
      %2115 = vsyncadd [#allocation3], %s2114
      %s2117 = sshll.u32 [#allocation2], 4
      %s2118 = int_to_ptr.vmem [resolvable:$true] %s2117
      %2120 = dma.vmem_to_hbm [thread:$0]  %s2118, 32, %s9, [#allocation3]
    $region41: #{classifier_forward.1} parent=1 // pred_fallthru
      _
    // Predicated region
    $region42: #{classifier_forward.1} parent=1 // pred_check
      _
    $region43: #{classifier_forward.1} parent=1 // pred_check_branch
      %2122 = sbr.rel (0) target = $region45
    $region44: #{classifier_forward.1} parent=1 // pred_region
      %2123 = dma.done [#allocation3], 32
    $region45: #{classifier_forward.1} parent=1 // pred_fallthru
      _
    %2124 = vsyncpa [#allocation3], 1

</llo_original>
